<compile_context>
chip_gen: v7x
topology: tpu7x:2x2x1
jax: 0.10.0
libtpu: 0.0.40
codegen_flags: <defaults>
</compile_context>

<pallas_src>
import functools

import jax
import jax.numpy as jnp
from jax.experimental import pallas as pl
from jax.experimental.pallas import tpu as pltpu


_VMEM_LIMIT = 48 * 1024 * 1024  # conservative budget that also fits v7x (64 MiB VMEM)


def _round_up(x, m):
    return -(-x // m) * m


# ----------------------- kernel A: matmul + BN (+ReLU), K-tiled -----------------------
def _matmul_bn_kernel(x_ref, w_ref, scale_ref, bias_ref, o_ref, acc_ref, *, relu):
    k = pl.program_id(1)

    @pl.when(k == 0)
    def _():
        acc_ref[...] = jnp.zeros_like(acc_ref)

    acc_ref[...] += jnp.dot(x_ref[...], w_ref[...], preferred_element_type=jnp.float32)

    @pl.when(k == pl.num_programs(1) - 1)
    def _():
        y = acc_ref[...] * scale_ref[...] + bias_ref[...]   # folded BatchNorm
        if relu:
            y = jnp.maximum(y, 0.0)
        o_ref[...] = y.astype(o_ref.dtype)


def matmul_bn(x, w, scale, bias, *, relu, out_dtype, tm_cap=512):
    """out = [relu]((x @ w) * scale + bias); bf16 operands, f32 accumulation."""
    M, K = x.shape
    N = w.shape[1]

    tm = min(tm_cap, _round_up(M, 8))
    Mp = _round_up(M, tm)
    if Mp != M:
        x = jnp.pad(x, ((0, Mp - M), (0, 0)))          # padded rows are sliced off below

    # K reduction tiling keeps per-step VMEM bounded at real ResNet sizes.
    tk = 512 if (K > 1024 and K % 512 == 0) else K
    nk = K // tk

    kernel = functools.partial(_matmul_bn_kernel, relu=relu)
    out = pl.pallas_call(
        kernel,
        out_shape=jax.ShapeDtypeStruct((Mp, N), out_dtype),
        grid_spec=pltpu.PrefetchScalarGridSpec(
            num_scalar_prefetch=0,
            grid=(Mp // tm, nk),
            in_specs=[
                pl.BlockSpec((tm, tk), lambda i, k: (i, k)),
                pl.BlockSpec((tk, N), lambda i, k: (k, 0)),
                pl.BlockSpec((1, N), lambda i, k: (0, 0)),
                pl.BlockSpec((1, N), lambda i, k: (0, 0)),
            ],
            out_specs=pl.BlockSpec((tm, N), lambda i, k: (i, 0)),
            scratch_shapes=[pltpu.VMEM((tm, N), jnp.float32)],
        ),
        compiler_params=pltpu.CompilerParams(
            dimension_semantics=("parallel", "arbitrary"),
            vmem_limit_bytes=_VMEM_LIMIT,
        ),
    )(x, w, scale, bias)
    return out[:M] if Mp != M else out


# ------------------ kernel B: 3x3 conv + BN + ReLU, no materialized im2col ------------
def _conv3x3_kernel(r0_ref, r1_ref, r2_ref, w_ref, scale_ref, bias_ref, o_ref, *, wo):
    f2 = w_ref.shape[-1]
    acc = jnp.zeros((wo, f2), jnp.float32)
    rows = (r0_ref, r1_ref, r2_ref)
    for di in range(3):
        row = rows[di][0, 0]                           # (Wo+2, f1) padded row r+di
        for dj in range(3):
            acc += jnp.dot(row[dj:dj + wo, :], w_ref[di * 3 + dj],
                           preferred_element_type=jnp.float32)
    y = acc * scale_ref[...] + bias_ref[...]           # folded BatchNorm
    y = jnp.maximum(y, 0.0)
    o_ref[0, 0] = y.astype(o_ref.dtype)


def conv3x3_bn_relu(y1p, w2, scale, bias):
    """y1p: (N, Ho+2, Wo+2, f1) zero-padded bf16; w2: (9, f1, f2). -> (N, Ho, Wo, f2)."""
    n, hp, wp, f1 = y1p.shape
    ho, wo = hp - 2, wp - 2
    f2 = w2.shape[-1]
    kernel = functools.partial(_conv3x3_kernel, wo=wo)
    return pl.pallas_call(
        kernel,
        out_shape=jax.ShapeDtypeStruct((n, ho, wo, f2), jnp.bfloat16),
        grid_spec=pltpu.PrefetchScalarGridSpec(
            num_scalar_prefetch=0,
            grid=(n, ho),
            in_specs=[
                # same HBM array three times, H-shifted by 0/1/2 rows via the index_map
                pl.BlockSpec((1, 1, wp, f1), lambda b, r: (b, r, 0, 0)),
                pl.BlockSpec((1, 1, wp, f1), lambda b, r: (b, r + 1, 0, 0)),
                pl.BlockSpec((1, 1, wp, f1), lambda b, r: (b, r + 2, 0, 0)),
                pl.BlockSpec((9, f1, f2), lambda b, r: (0, 0, 0)),
                pl.BlockSpec((1, f2), lambda b, r: (0, 0)),
                pl.BlockSpec((1, f2), lambda b, r: (0, 0)),
            ],
            out_specs=pl.BlockSpec((1, 1, wo, f2), lambda b, r: (b, r, 0, 0)),
        ),
        compiler_params=pltpu.CompilerParams(
            dimension_semantics=("parallel", "arbitrary"),
            vmem_limit_bytes=_VMEM_LIMIT,
        ),
    )(y1p, y1p, y1p, w2, scale, bias)


# --------- kernel C: conv3 + bn3 + shortcut conv + bn_short + add + ReLU (fused) -------
def _conv3_shortcut_kernel(y2_ref, xs_ref, w3_ref, ws_ref,
                           s3_ref, b3_ref, ss_ref, bs_ref, o_ref):
    main = jnp.dot(y2_ref[...], w3_ref[...], preferred_element_type=jnp.float32)
    main = main * s3_ref[...] + b3_ref[...]
    sc = jnp.dot(xs_ref[...], ws_ref[...], preferred_element_type=jnp.float32)
    sc = sc * ss_ref[...] + bs_ref[...]
    o_ref[...] = jnp.maximum(main + sc, 0.0).astype(o_ref.dtype)


def conv3_shortcut(y2, xs, w3, ws, s3, b3, ss, bs, *, tm_cap=512):
    M, f2 = y2.shape
    cin = xs.shape[1]
    f3 = w3.shape[1]

    tm = min(tm_cap, _round_up(M, 8))
    Mp = _round_up(M, tm)
    if Mp != M:
        y2 = jnp.pad(y2, ((0, Mp - M), (0, 0)))
        xs = jnp.pad(xs, ((0, Mp - M), (0, 0)))

    out = pl.pallas_call(
        _conv3_shortcut_kernel,
        out_shape=jax.ShapeDtypeStruct((Mp, f3), jnp.float32),
        grid_spec=pltpu.PrefetchScalarGridSpec(
            num_scalar_prefetch=0,
            grid=(Mp // tm,),
            in_specs=[
                pl.BlockSpec((tm, f2), lambda i: (i, 0)),
                pl.BlockSpec((tm, cin), lambda i: (i, 0)),
                pl.BlockSpec((f2, f3), lambda i: (0, 0)),
                pl.BlockSpec((cin, f3), lambda i: (0, 0)),
                pl.BlockSpec((1, f3), lambda i: (0, 0)),
                pl.BlockSpec((1, f3), lambda i: (0, 0)),
                pl.BlockSpec((1, f3), lambda i: (0, 0)),
                pl.BlockSpec((1, f3), lambda i: (0, 0)),
            ],
            out_specs=pl.BlockSpec((tm, f3), lambda i: (i, 0)),
        ),
        compiler_params=pltpu.CompilerParams(
            dimension_semantics=("parallel",),
            vmem_limit_bytes=_VMEM_LIMIT,
        ),
    )(y2, xs, w3, ws, s3, b3, ss, bs)
    return out[:M] if Mp != M else out


# --------------------------------- JAX glue -------------------------------------------
def bn_fold(gamma, beta, mean, var, eps=1e-5):
    scale = gamma / jnp.sqrt(var + eps)
    bias = beta - mean * scale
    return scale, bias


def prepare_params(params, eps=1e-5):
    """Fold BN and pre-transpose/pre-cast weights once, outside the hot path."""
    f1 = params["w1"].shape[0]
    f2 = params["w2"].shape[0]
    f3 = params["w3"].shape[0]
    s1, b1 = bn_fold(*params["bn1"], eps=eps)
    s2, b2 = bn_fold(*params["bn2"], eps=eps)
    s3, b3 = bn_fold(*params["bn3"], eps=eps)
    ss, bs = bn_fold(*params["bns"], eps=eps)
    return {
        "w1": params["w1"][:, :, 0, 0].T.astype(jnp.bfloat16),                 # (Cin, f1)
        "w2": jnp.transpose(params["w2"], (2, 3, 1, 0))                         # (3,3,f1,f2)
                 .reshape(9, f1, f2).astype(jnp.bfloat16),                      # (9, f1, f2)
        "w3": params["w3"][:, :, 0, 0].T.astype(jnp.bfloat16),                 # (f2, f3)
        "ws": params["ws"][:, :, 0, 0].T.astype(jnp.bfloat16),                 # (Cin, f3)
        "s1": s1.reshape(1, f1), "b1": b1.reshape(1, f1),
        "s2": s2.reshape(1, f2), "b2": b2.reshape(1, f2),
        "s3": s3.reshape(1, f3), "b3": b3.reshape(1, f3),
        "ss": ss.reshape(1, f3), "bs": bs.reshape(1, f3),
    }


@functools.partial(jax.jit, static_argnames=("stride",))
def conv_block_forward(x_nchw, prep, stride=2):
    n, cin, h, w = x_nchw.shape
    x = jnp.transpose(x_nchw, (0, 2, 3, 1)).astype(jnp.bfloat16)     # NHWC, bf16
    xs = x[:, ::stride, ::stride, :]                                  # 1x1 stride-s subsample
    ho, wo = xs.shape[1], xs.shape[2]
    M = n * ho * wo
    xs2d = xs.reshape(M, cin)

    f1 = prep["w1"].shape[1]
    f2 = prep["w2"].shape[2]
    f3 = prep["w3"].shape[1]

    # conv1 (1x1, stride) + bn1 + relu
    y1 = matmul_bn(xs2d, prep["w1"], prep["s1"], prep["b1"],
                   relu=True, out_dtype=jnp.bfloat16)                 # (M, f1) bf16

    # conv2 (3x3, pad=1) + bn2 + relu — fused 9-tap accumulation, no im2col tensor
    y1p = jnp.pad(y1.reshape(n, ho, wo, f1), ((0, 0), (1, 1), (1, 1), (0, 0)))
    y2 = conv3x3_bn_relu(y1p, prep["w2"], prep["s2"], prep["b2"])     # (n,ho,wo,f2) bf16

    # conv3 (1x1) + bn3 + shortcut (1x1 stride conv + bn) + add + relu, one kernel
    y3 = conv3_shortcut(y2.reshape(M, f2), xs2d,
                        prep["w3"], prep["ws"],
                        prep["s3"], prep["b3"], prep["ss"], prep["bs"])  # (M, f3) f32

    out = y3.reshape(n, ho, wo, f3)
    return jnp.transpose(out, (0, 3, 1, 2))                           # back to NCHW


# ------------------------------ pure-JAX reference -------------------------------------
def reference_forward(x, params, stride=2, eps=1e-5):
    def conv(z, w, s, pad):
        return jax.lax.conv_general_dilated(
            z, w, window_strides=(s, s), padding=pad,
            dimension_numbers=("NCHW", "OIHW", "NCHW"))

    def bn(z, p):
        g, b, m, v = (t[None, :, None, None] for t in p)
        return (z - m) / jnp.sqrt(v + eps) * g + b

    sc = x
    y = jax.nn.relu(bn(conv(x, params["w1"], stride, "VALID"), params["bn1"]))
    y = jax.nn.relu(bn(conv(y, params["w2"], 1, ((1, 1), (1, 1))), params["bn2"]))
    y = bn(conv(y, params["w3"], 1, "VALID"), params["bn3"])
    sc = bn(conv(sc, params["ws"], stride, "VALID"), params["bns"])
    return jax.nn.relu(y + sc)


# ------------------------------------- main ---------------------------------------------
def make_params(key, in_channels, filters):
    f1, f2, f3 = filters
    ks = jax.random.split(key, 8)

    def bn_p(k, c):
        k1, k2, k3, k4 = jax.random.split(k, 4)
        gamma = jax.random.uniform(k1, (c,), minval=0.5, maxval=1.5)
        beta = jax.random.normal(k2, (c,)) * 0.1
        mean = jax.random.normal(k3, (c,)) * 0.1
        var = jax.random.uniform(k4, (c,), minval=0.5, maxval=1.5)
        return (gamma.astype(jnp.float32), beta.astype(jnp.float32),
                mean.astype(jnp.float32), var.astype(jnp.float32))

    return {
        "w1": (jax.random.normal(ks[0], (f1, in_channels, 1, 1)) * 0.1).astype(jnp.float32),
        "w2": (jax.random.normal(ks[1], (f2, f1, 3, 3)) * 0.1).astype(jnp.float32),
        "w3": (jax.random.normal(ks[2], (f3, f2, 1, 1)) * 0.1).astype(jnp.float32),
        "ws": (jax.random.normal(ks[3], (f3, in_channels, 1, 1)) * 0.1).astype(jnp.float32),
        "bn1": bn_p(ks[4], f1),
        "bn2": bn_p(ks[5], f2),
        "bn3": bn_p(ks[6], f3),
        "bns": bn_p(ks[7], f3),
    }


if __name__ == "__main__":
    N, CIN, H, W = 2, 4, 16, 16
    FILTERS = (4, 8, 16)
    STRIDE = 2

    key = jax.random.PRNGKey(0)
    kx, kp = jax.random.split(key)
    x = jax.random.normal(kx, (N, CIN, H, W), dtype=jnp.float32)
    params = make_params(kp, CIN, FILTERS)
    prep = prepare_params(params)

    out = conv_block_forward(x, prep, stride=STRIDE)
    out = jax.block_until_ready(out)

    ref = reference_forward(x, params, stride=STRIDE)
    assert out.shape == ref.shape == (N, FILTERS[2], H // STRIDE, W // STRIDE)
    rel_err = float(jnp.linalg.norm(out - ref) / (jnp.linalg.norm(ref) + 1e-12))
    assert rel_err < 2e-2, f"mismatch vs reference conv: rel_err={rel_err}"

    print("KERNEL_OK")
</pallas_src>

<mosaic_0001>
module attributes {stable_mosaic.version = 11 : i64} {
  func.func @_matmul_bn_kernel(%arg0: i32, %arg1: i32, %arg2: memref<128x4xbf16, #tpu.memory_space<vmem>>, %arg3: memref<4x4xbf16, #tpu.memory_space<vmem>>, %arg4: memref<1x4xf32, #tpu.memory_space<vmem>>, %arg5: memref<1x4xf32, #tpu.memory_space<vmem>>, %arg6: memref<128x4xbf16, #tpu.memory_space<vmem>>, %arg7: memref<128x4xf32, #tpu.memory_space<vmem>>) attributes {dimension_semantics = [#tpu.dimension_semantics<parallel>, #tpu.dimension_semantics<arbitrary>], iteration_bounds = array<i64: 1, 1>, scalar_prefetch = 0 : i64, scratch_operands = 1 : i64, tpu.core_type = #tpu.core_type<tc>, window_params = [{transform_indices = @transform_0, window_bounds = array<i64: 128, 4>}, {transform_indices = @transform_1, window_bounds = array<i64: 4, 4>}, {pipeline_mode = #tpu.pipeline_mode<synchronous>, transform_indices = @transform_2, window_bounds = array<i64: 1, 4>}, {pipeline_mode = #tpu.pipeline_mode<synchronous>, transform_indices = @transform_3, window_bounds = array<i64: 1, 4>}, {transform_indices = @transform_4, window_bounds = array<i64: 128, 4>}]} {
    %c0_i32 = arith.constant 0 : i32
    %0 = arith.cmpi eq, %arg1, %c0_i32 : i32
    %1 = arith.extui %0 : i1 to i32
    %c0_i32_0 = arith.constant 0 : i32
    %2 = arith.cmpi ne, %1, %c0_i32_0 : i32
    scf.if %2 {
      %cst_10 = arith.constant 0.000000e+00 : f32
      %12 = vector.broadcast %cst_10 : f32 to vector<128x4xf32>
      %c0_11 = arith.constant 0 : index
      %c0_12 = arith.constant 0 : index
      %13 = vector.load %arg7[%c0_11, %c0_12] : memref<128x4xf32, #tpu.memory_space<vmem>>, vector<128x4xf32>
      tpu.vector_store %arg7[%c0_11, %c0_12], %12 {strides = array<i32>} : memref<128x4xf32, #tpu.memory_space<vmem>>, vector<128x4xf32>,
    } else {
    }
    %c0 = arith.constant 0 : index
    %c0_1 = arith.constant 0 : index
    %3 = vector.load %arg7[%c0, %c0_1] : memref<128x4xf32, #tpu.memory_space<vmem>>, vector<128x4xf32>
    %c0_2 = arith.constant 0 : index
    %c0_3 = arith.constant 0 : index
    %4 = vector.load %arg2[%c0_2, %c0_3] : memref<128x4xbf16, #tpu.memory_space<vmem>>, vector<128x4xbf16>
    %c0_4 = arith.constant 0 : index
    %c0_5 = arith.constant 0 : index
    %5 = vector.load %arg3[%c0_4, %c0_5] : memref<4x4xbf16, #tpu.memory_space<vmem>>, vector<4x4xbf16>
    %cst = arith.constant dense<0.000000e+00> : vector<128x4xf32>
    %6 = tpu.matmul %4, %5, %cst {dimension_numbers = #tpu.dot_dimension_numbers<[1], [0], [0], [1], [0, 0, 1, 1], [], []>} : vector<128x4xbf16>, vector<4x4xbf16>, vector<128x4xf32> -> vector<128x4xf32>
    %7 = arith.addf %3, %6 : vector<128x4xf32>
    %c0_6 = arith.constant 0 : index
    %c0_7 = arith.constant 0 : index
    %8 = vector.load %arg7[%c0_6, %c0_7] : memref<128x4xf32, #tpu.memory_space<vmem>>, vector<128x4xf32>
    tpu.vector_store %arg7[%c0_6, %c0_7], %7 {strides = array<i32>} : memref<128x4xf32, #tpu.memory_space<vmem>>, vector<128x4xf32>,
    %c0_i32_8 = arith.constant 0 : i32
    %9 = arith.cmpi eq, %arg1, %c0_i32_8 : i32
    %10 = arith.extui %9 : i1 to i32
    %c0_i32_9 = arith.constant 0 : i32
    %11 = arith.cmpi ne, %10, %c0_i32_9 : i32
    scf.if %11 {
      %c0_10 = arith.constant 0 : index
      %c0_11 = arith.constant 0 : index
      %12 = vector.load %arg7[%c0_10, %c0_11] : memref<128x4xf32, #tpu.memory_space<vmem>>, vector<128x4xf32>
      %c0_12 = arith.constant 0 : index
      %c0_13 = arith.constant 0 : index
      %13 = vector.load %arg4[%c0_12, %c0_13] : memref<1x4xf32, #tpu.memory_space<vmem>>, vector<1x4xf32>
      %14 = vector.broadcast %13 : vector<1x4xf32> to vector<128x4xf32>
      %15 = arith.mulf %12, %14 : vector<128x4xf32>
      %c0_14 = arith.constant 0 : index
      %c0_15 = arith.constant 0 : index
      %16 = vector.load %arg5[%c0_14, %c0_15] : memref<1x4xf32, #tpu.memory_space<vmem>>, vector<1x4xf32>
      %17 = vector.broadcast %16 : vector<1x4xf32> to vector<128x4xf32>
      %18 = arith.addf %15, %17 : vector<128x4xf32>
      %cst_16 = arith.constant 0.000000e+00 : f32
      %19 = vector.broadcast %cst_16 : f32 to vector<128x4xf32>
      %20 = arith.maximumf %18, %19 : vector<128x4xf32>
      %21 = arith.truncf %20 : vector<128x4xf32> to vector<128x4xbf16>
      %c0_17 = arith.constant 0 : index
      %c0_18 = arith.constant 0 : index
      %22 = vector.load %arg6[%c0_17, %c0_18] : memref<128x4xbf16, #tpu.memory_space<vmem>>, vector<128x4xbf16>
      tpu.vector_store %arg6[%c0_17, %c0_18], %21 {strides = array<i32>} : memref<128x4xbf16, #tpu.memory_space<vmem>>, vector<128x4xbf16>,
    } else {
    }
    return
  }
  func.func @transform_0(%arg0: i32, %arg1: i32) -> (i32, i32) {
    %c0_i32 = arith.constant 0 : i32
    return %arg0, %arg1 : i32, i32
  }
  func.func @transform_1(%arg0: i32, %arg1: i32) -> (i32, i32) {
    %c0_i32 = arith.constant 0 : i32
    %c0_i32_0 = arith.constant 0 : i32
    return %arg1, %c0_i32 : i32, i32
  }
  func.func @transform_2(%arg0: i32, %arg1: i32) -> (i32, i32) {
    %c0_i32 = arith.constant 0 : i32
    %c0_i32_0 = arith.constant 0 : i32
    %c0_i32_1 = arith.constant 0 : i32
    return %c0_i32, %c0_i32_0 : i32, i32
  }
  func.func @transform_3(%arg0: i32, %arg1: i32) -> (i32, i32) {
    %c0_i32 = arith.constant 0 : i32
    %c0_i32_0 = arith.constant 0 : i32
    %c0_i32_1 = arith.constant 0 : i32
    return %c0_i32, %c0_i32_0 : i32, i32
  }
  func.func @transform_4(%arg0: i32, %arg1: i32) -> (i32, i32) {
    %c0_i32 = arith.constant 0 : i32
    %c0_i32_0 = arith.constant 0 : i32
    return %arg0, %c0_i32 : i32, i32
  }
}

module attributes {stable_mosaic.version = 11 : i64} {
  func.func @_conv3x3_kernel(%arg0: i32, %arg1: i32, %arg2: memref<1x1x10x4xbf16, #tpu.memory_space<vmem>>, %arg3: memref<1x1x10x4xbf16, #tpu.memory_space<vmem>>, %arg4: memref<1x1x10x4xbf16, #tpu.memory_space<vmem>>, %arg5: memref<9x4x8xbf16, #tpu.memory_space<vmem>>, %arg6: memref<1x8xf32, #tpu.memory_space<vmem>>, %arg7: memref<1x8xf32, #tpu.memory_space<vmem>>, %arg8: memref<1x1x8x8xbf16, #tpu.memory_space<vmem>>) attributes {dimension_semantics = [#tpu.dimension_semantics<parallel>, #tpu.dimension_semantics<arbitrary>], iteration_bounds = array<i64: 2, 8>, scalar_prefetch = 0 : i64, scratch_operands = 0 : i64, tpu.core_type = #tpu.core_type<tc>, window_params = [{transform_indices = @transform_0, window_bounds = array<i64: 1, 1, 10, 4>}, {transform_indices = @transform_1, window_bounds = array<i64: 1, 1, 10, 4>}, {transform_indices = @transform_2, window_bounds = array<i64: 1, 1, 10, 4>}, {pipeline_mode = #tpu.pipeline_mode<synchronous>, transform_indices = @transform_3, window_bounds = array<i64: 9, 4, 8>}, {pipeline_mode = #tpu.pipeline_mode<synchronous>, transform_indices = @transform_4, window_bounds = array<i64: 1, 8>}, {pipeline_mode = #tpu.pipeline_mode<synchronous>, transform_indices = @transform_5, window_bounds = array<i64: 1, 8>}, {transform_indices = @transform_6, window_bounds = array<i64: 1, 1, 8, 8>}]} {
    %cst = arith.constant 0.000000e+00 : f32
    %0 = vector.broadcast %cst : f32 to vector<8x8xf32>
    %c0 = arith.constant 0 : index
    %c0_0 = arith.constant 0 : index
    %c0_1 = arith.constant 0 : index
    %c0_2 = arith.constant 0 : index
    %1 = vector.load %arg2[%c0, %c0_0, %c0_1, %c0_2] : memref<1x1x10x4xbf16, #tpu.memory_space<vmem>>, vector<1x1x10x4xbf16>
    %2 = vector.shape_cast %1 : vector<1x1x10x4xbf16> to vector<10x4xbf16>
    %3 = vector.extract_strided_slice %2 {offsets = [0, 0], sizes = [8, 4], strides = [1, 1]} : vector<10x4xbf16> to vector<8x4xbf16>
    %c0_3 = arith.constant 0 : index
    %c0_4 = arith.constant 0 : index
    %c0_5 = arith.constant 0 : index
    %4 = vector.load %arg5[%c0_3, %c0_4, %c0_5] : memref<9x4x8xbf16, #tpu.memory_space<vmem>>, vector<1x4x8xbf16>
    %5 = vector.shape_cast %4 : vector<1x4x8xbf16> to vector<4x8xbf16>
    %cst_6 = arith.constant dense<0.000000e+00> : vector<8x8xf32>
    %6 = tpu.matmul %3, %5, %cst_6 {dimension_numbers = #tpu.dot_dimension_numbers<[1], [0], [0], [1], [0, 0, 1, 1], [], []>} : vector<8x4xbf16>, vector<4x8xbf16>, vector<8x8xf32> -> vector<8x8xf32>
    %7 = arith.addf %0, %6 : vector<8x8xf32>
    %8 = vector.extract_strided_slice %2 {offsets = [1, 0], sizes = [8, 4], strides = [1, 1]} : vector<10x4xbf16> to vector<8x4xbf16>
    %c1 = arith.constant 1 : index
    %c0_7 = arith.constant 0 : index
    %c0_8 = arith.constant 0 : index
    %9 = vector.load %arg5[%c1, %c0_7, %c0_8] : memref<9x4x8xbf16, #tpu.memory_space<vmem>>, vector<1x4x8xbf16>
    %10 = vector.shape_cast %9 : vector<1x4x8xbf16> to vector<4x8xbf16>
    %cst_9 = arith.constant dense<0.000000e+00> : vector<8x8xf32>
    %11 = tpu.matmul %8, %10, %cst_9 {dimension_numbers = #tpu.dot_dimension_numbers<[1], [0], [0], [1], [0, 0, 1, 1], [], []>} : vector<8x4xbf16>, vector<4x8xbf16>, vector<8x8xf32> -> vector<8x8xf32>
    %12 = arith.addf %7, %11 : vector<8x8xf32>
    %13 = vector.extract_strided_slice %2 {offsets = [2, 0], sizes = [8, 4], strides = [1, 1]} : vector<10x4xbf16> to vector<8x4xbf16>
    %c2 = arith.constant 2 : index
    %c0_10 = arith.constant 0 : index
    %c0_11 = arith.constant 0 : index
    %14 = vector.load %arg5[%c2, %c0_10, %c0_11] : memref<9x4x8xbf16, #tpu.memory_space<vmem>>, vector<1x4x8xbf16>
    %15 = vector.shape_cast %14 : vector<1x4x8xbf16> to vector<4x8xbf16>
    %cst_12 = arith.constant dense<0.000000e+00> : vector<8x8xf32>
    %16 = tpu.matmul %13, %15, %cst_12 {dimension_numbers = #tpu.dot_dimension_numbers<[1], [0], [0], [1], [0, 0, 1, 1], [], []>} : vector<8x4xbf16>, vector<4x8xbf16>, vector<8x8xf32> -> vector<8x8xf32>
    %17 = arith.addf %12, %16 : vector<8x8xf32>
    %c0_13 = arith.constant 0 : index
    %c0_14 = arith.constant 0 : index
    %c0_15 = arith.constant 0 : index
    %c0_16 = arith.constant 0 : index
    %18 = vector.load %arg3[%c0_13, %c0_14, %c0_15, %c0_16] : memref<1x1x10x4xbf16, #tpu.memory_space<vmem>>, vector<1x1x10x4xbf16>
    %19 = vector.shape_cast %18 : vector<1x1x10x4xbf16> to vector<10x4xbf16>
    %20 = vector.extract_strided_slice %19 {offsets = [0, 0], sizes = [8, 4], strides = [1, 1]} : vector<10x4xbf16> to vector<8x4xbf16>
    %c3 = arith.constant 3 : index
    %c0_17 = arith.constant 0 : index
    %c0_18 = arith.constant 0 : index
    %21 = vector.load %arg5[%c3, %c0_17, %c0_18] : memref<9x4x8xbf16, #tpu.memory_space<vmem>>, vector<1x4x8xbf16>
    %22 = vector.shape_cast %21 : vector<1x4x8xbf16> to vector<4x8xbf16>
    %cst_19 = arith.constant dense<0.000000e+00> : vector<8x8xf32>
    %23 = tpu.matmul %20, %22, %cst_19 {dimension_numbers = #tpu.dot_dimension_numbers<[1], [0], [0], [1], [0, 0, 1, 1], [], []>} : vector<8x4xbf16>, vector<4x8xbf16>, vector<8x8xf32> -> vector<8x8xf32>
    %24 = arith.addf %17, %23 : vector<8x8xf32>
    %25 = vector.extract_strided_slice %19 {offsets = [1, 0], sizes = [8, 4], strides = [1, 1]} : vector<10x4xbf16> to vector<8x4xbf16>
    %c4 = arith.constant 4 : index
    %c0_20 = arith.constant 0 : index
    %c0_21 = arith.constant 0 : index
    %26 = vector.load %arg5[%c4, %c0_20, %c0_21] : memref<9x4x8xbf16, #tpu.memory_space<vmem>>, vector<1x4x8xbf16>
    %27 = vector.shape_cast %26 : vector<1x4x8xbf16> to vector<4x8xbf16>
    %cst_22 = arith.constant dense<0.000000e+00> : vector<8x8xf32>
    %28 = tpu.matmul %25, %27, %cst_22 {dimension_numbers = #tpu.dot_dimension_numbers<[1], [0], [0], [1], [0, 0, 1, 1], [], []>} : vector<8x4xbf16>, vector<4x8xbf16>, vector<8x8xf32> -> vector<8x8xf32>
    %29 = arith.addf %24, %28 : vector<8x8xf32>
    %30 = vector.extract_strided_slice %19 {offsets = [2, 0], sizes = [8, 4], strides = [1, 1]} : vector<10x4xbf16> to vector<8x4xbf16>
    %c5 = arith.constant 5 : index
    %c0_23 = arith.constant 0 : index
    %c0_24 = arith.constant 0 : index
    %31 = vector.load %arg5[%c5, %c0_23, %c0_24] : memref<9x4x8xbf16, #tpu.memory_space<vmem>>, vector<1x4x8xbf16>
    %32 = vector.shape_cast %31 : vector<1x4x8xbf16> to vector<4x8xbf16>
    %cst_25 = arith.constant dense<0.000000e+00> : vector<8x8xf32>
    %33 = tpu.matmul %30, %32, %cst_25 {dimension_numbers = #tpu.dot_dimension_numbers<[1], [0], [0], [1], [0, 0, 1, 1], [], []>} : vector<8x4xbf16>, vector<4x8xbf16>, vector<8x8xf32> -> vector<8x8xf32>
    %34 = arith.addf %29, %33 : vector<8x8xf32>
    %c0_26 = arith.constant 0 : index
    %c0_27 = arith.constant 0 : index
    %c0_28 = arith.constant 0 : index
    %c0_29 = arith.constant 0 : index
    %35 = vector.load %arg4[%c0_26, %c0_27, %c0_28, %c0_29] : memref<1x1x10x4xbf16, #tpu.memory_space<vmem>>, vector<1x1x10x4xbf16>
    %36 = vector.shape_cast %35 : vector<1x1x10x4xbf16> to vector<10x4xbf16>
    %37 = vector.extract_strided_slice %36 {offsets = [0, 0], sizes = [8, 4], strides = [1, 1]} : vector<10x4xbf16> to vector<8x4xbf16>
    %c6 = arith.constant 6 : index
    %c0_30 = arith.constant 0 : index
    %c0_31 = arith.constant 0 : index
    %38 = vector.load %arg5[%c6, %c0_30, %c0_31] : memref<9x4x8xbf16, #tpu.memory_space<vmem>>, vector<1x4x8xbf16>
    %39 = vector.shape_cast %38 : vector<1x4x8xbf16> to vector<4x8xbf16>
    %cst_32 = arith.constant dense<0.000000e+00> : vector<8x8xf32>
    %40 = tpu.matmul %37, %39, %cst_32 {dimension_numbers = #tpu.dot_dimension_numbers<[1], [0], [0], [1], [0, 0, 1, 1], [], []>} : vector<8x4xbf16>, vector<4x8xbf16>, vector<8x8xf32> -> vector<8x8xf32>
    %41 = arith.addf %34, %40 : vector<8x8xf32>
    %42 = vector.extract_strided_slice %36 {offsets = [1, 0], sizes = [8, 4], strides = [1, 1]} : vector<10x4xbf16> to vector<8x4xbf16>
    %c7 = arith.constant 7 : index
    %c0_33 = arith.constant 0 : index
    %c0_34 = arith.constant 0 : index
    %43 = vector.load %arg5[%c7, %c0_33, %c0_34] : memref<9x4x8xbf16, #tpu.memory_space<vmem>>, vector<1x4x8xbf16>
    %44 = vector.shape_cast %43 : vector<1x4x8xbf16> to vector<4x8xbf16>
    %cst_35 = arith.constant dense<0.000000e+00> : vector<8x8xf32>
    %45 = tpu.matmul %42, %44, %cst_35 {dimension_numbers = #tpu.dot_dimension_numbers<[1], [0], [0], [1], [0, 0, 1, 1], [], []>} : vector<8x4xbf16>, vector<4x8xbf16>, vector<8x8xf32> -> vector<8x8xf32>
    %46 = arith.addf %41, %45 : vector<8x8xf32>
    %47 = vector.extract_strided_slice %36 {offsets = [2, 0], sizes = [8, 4], strides = [1, 1]} : vector<10x4xbf16> to vector<8x4xbf16>
    %c8 = arith.constant 8 : index
    %c0_36 = arith.constant 0 : index
    %c0_37 = arith.constant 0 : index
    %48 = vector.load %arg5[%c8, %c0_36, %c0_37] : memref<9x4x8xbf16, #tpu.memory_space<vmem>>, vector<1x4x8xbf16>
    %49 = vector.shape_cast %48 : vector<1x4x8xbf16> to vector<4x8xbf16>
    %cst_38 = arith.constant dense<0.000000e+00> : vector<8x8xf32>
    %50 = tpu.matmul %47, %49, %cst_38 {dimension_numbers = #tpu.dot_dimension_numbers<[1], [0], [0], [1], [0, 0, 1, 1], [], []>} : vector<8x4xbf16>, vector<4x8xbf16>, vector<8x8xf32> -> vector<8x8xf32>
    %51 = arith.addf %46, %50 : vector<8x8xf32>
    %c0_39 = arith.constant 0 : index
    %c0_40 = arith.constant 0 : index
    %52 = vector.load %arg6[%c0_39, %c0_40] : memref<1x8xf32, #tpu.memory_space<vmem>>, vector<1x8xf32>
    %53 = vector.broadcast %52 : vector<1x8xf32> to vector<8x8xf32>
    %54 = arith.mulf %51, %53 : vector<8x8xf32>
    %c0_41 = arith.constant 0 : index
    %c0_42 = arith.constant 0 : index
    %55 = vector.load %arg7[%c0_41, %c0_42] : memref<1x8xf32, #tpu.memory_space<vmem>>, vector<1x8xf32>
    %56 = vector.broadcast %55 : vector<1x8xf32> to vector<8x8xf32>
    %57 = arith.addf %54, %56 : vector<8x8xf32>
    %cst_43 = arith.constant 0.000000e+00 : f32
    %58 = vector.broadcast %cst_43 : f32 to vector<8x8xf32>
    %59 = arith.maximumf %57, %58 : vector<8x8xf32>
    %60 = arith.truncf %59 : vector<8x8xf32> to vector<8x8xbf16>
    %c0_44 = arith.constant 0 : index
    %c0_45 = arith.constant 0 : index
    %c0_46 = arith.constant 0 : index
    %c0_47 = arith.constant 0 : index
    %61 = vector.load %arg8[%c0_44, %c0_45, %c0_46, %c0_47] : memref<1x1x8x8xbf16, #tpu.memory_space<vmem>>, vector<1x1x8x8xbf16>
    %62 = vector.shape_cast %61 : vector<1x1x8x8xbf16> to vector<8x8xbf16>
    %63 = vector.shape_cast %60 : vector<8x8xbf16> to vector<1x1x8x8xbf16>
    tpu.vector_store %arg8[%c0_44, %c0_45, %c0_46, %c0_47], %63 {strides = array<i32>} : memref<1x1x8x8xbf16, #tpu.memory_space<vmem>>, vector<1x1x8x8xbf16>,
    return
  }
  func.func @transform_0(%arg0: i32, %arg1: i32) -> (i32, i32, i32, i32) {
    %c0_i32 = arith.constant 0 : i32
    %c0_i32_0 = arith.constant 0 : i32
    %c0_i32_1 = arith.constant 0 : i32
    return %arg0, %arg1, %c0_i32, %c0_i32_0 : i32, i32, i32, i32
  }
  func.func @transform_1(%arg0: i32, %arg1: i32) -> (i32, i32, i32, i32) {
    %c1_i32 = arith.constant 1 : i32
    %0 = arith.addi %arg1, %c1_i32 : i32
    %c0_i32 = arith.constant 0 : i32
    %c0_i32_0 = arith.constant 0 : i32
    %c0_i32_1 = arith.constant 0 : i32
    return %arg0, %0, %c0_i32, %c0_i32_0 : i32, i32, i32, i32
  }
  func.func @transform_2(%arg0: i32, %arg1: i32) -> (i32, i32, i32, i32) {
    %c2_i32 = arith.constant 2 : i32
    %0 = arith.addi %arg1, %c2_i32 : i32
    %c0_i32 = arith.constant 0 : i32
    %c0_i32_0 = arith.constant 0 : i32
    %c0_i32_1 = arith.constant 0 : i32
    return %arg0, %0, %c0_i32, %c0_i32_0 : i32, i32, i32, i32
  }
  func.func @transform_3(%arg0: i32, %arg1: i32) -> (i32, i32, i32) {
    %c0_i32 = arith.constant 0 : i32
    %c0_i32_0 = arith.constant 0 : i32
    %c0_i32_1 = arith.constant 0 : i32
    %c0_i32_2 = arith.constant 0 : i32
    return %c0_i32, %c0_i32_0, %c0_i32_1 : i32, i32, i32
  }
  func.func @transform_4(%arg0: i32, %arg1: i32) -> (i32, i32) {
    %c0_i32 = arith.constant 0 : i32
    %c0_i32_0 = arith.constant 0 : i32
    %c0_i32_1 = arith.constant 0 : i32
    return %c0_i32, %c0_i32_0 : i32, i32
  }
  func.func @transform_5(%arg0: i32, %arg1: i32) -> (i32, i32) {
    %c0_i32 = arith.constant 0 : i32
    %c0_i32_0 = arith.constant 0 : i32
    %c0_i32_1 = arith.constant 0 : i32
    return %c0_i32, %c0_i32_0 : i32, i32
  }
  func.func @transform_6(%arg0: i32, %arg1: i32) -> (i32, i32, i32, i32) {
    %c0_i32 = arith.constant 0 : i32
    %c0_i32_0 = arith.constant 0 : i32
    %c0_i32_1 = arith.constant 0 : i32
    return %arg0, %arg1, %c0_i32, %c0_i32_0 : i32, i32, i32, i32
  }
}

module attributes {stable_mosaic.version = 11 : i64} {
  func.func @_conv3_shortcut_kernel(%arg0: i32, %arg1: memref<128x8xbf16, #tpu.memory_space<vmem>>, %arg2: memref<128x4xbf16, #tpu.memory_space<vmem>>, %arg3: memref<8x16xbf16, #tpu.memory_space<vmem>>, %arg4: memref<4x16xbf16, #tpu.memory_space<vmem>>, %arg5: memref<1x16xf32, #tpu.memory_space<vmem>>, %arg6: memref<1x16xf32, #tpu.memory_space<vmem>>, %arg7: memref<1x16xf32, #tpu.memory_space<vmem>>, %arg8: memref<1x16xf32, #tpu.memory_space<vmem>>, %arg9: memref<128x16xf32, #tpu.memory_space<vmem>>) attributes {dimension_semantics = [#tpu.dimension_semantics<parallel>], iteration_bounds = array<i64: 1>, scalar_prefetch = 0 : i64, scratch_operands = 0 : i64, tpu.core_type = #tpu.core_type<tc>, window_params = [{transform_indices = @transform_0, window_bounds = array<i64: 128, 8>}, {transform_indices = @transform_1, window_bounds = array<i64: 128, 4>}, {pipeline_mode = #tpu.pipeline_mode<synchronous>, transform_indices = @transform_2, window_bounds = array<i64: 8, 16>}, {pipeline_mode = #tpu.pipeline_mode<synchronous>, transform_indices = @transform_3, window_bounds = array<i64: 4, 16>}, {pipeline_mode = #tpu.pipeline_mode<synchronous>, transform_indices = @transform_4, window_bounds = array<i64: 1, 16>}, {pipeline_mode = #tpu.pipeline_mode<synchronous>, transform_indices = @transform_5, window_bounds = array<i64: 1, 16>}, {pipeline_mode = #tpu.pipeline_mode<synchronous>, transform_indices = @transform_6, window_bounds = array<i64: 1, 16>}, {pipeline_mode = #tpu.pipeline_mode<synchronous>, transform_indices = @transform_7, window_bounds = array<i64: 1, 16>}, {transform_indices = @transform_8, window_bounds = array<i64: 128, 16>}]} {
    %c0 = arith.constant 0 : index
    %c0_0 = arith.constant 0 : index
    %0 = vector.load %arg1[%c0, %c0_0] : memref<128x8xbf16, #tpu.memory_space<vmem>>, vector<128x8xbf16>
    %c0_1 = arith.constant 0 : index
    %c0_2 = arith.constant 0 : index
    %1 = vector.load %arg3[%c0_1, %c0_2] : memref<8x16xbf16, #tpu.memory_space<vmem>>, vector<8x16xbf16>
    %cst = arith.constant dense<0.000000e+00> : vector<128x16xf32>
    %2 = tpu.matmul %0, %1, %cst {dimension_numbers = #tpu.dot_dimension_numbers<[1], [0], [0], [1], [0, 0, 1, 1], [], []>} : vector<128x8xbf16>, vector<8x16xbf16>, vector<128x16xf32> -> vector<128x16xf32>
    %c0_3 = arith.constant 0 : index
    %c0_4 = arith.constant 0 : index
    %3 = vector.load %arg5[%c0_3, %c0_4] : memref<1x16xf32, #tpu.memory_space<vmem>>, vector<1x16xf32>
    %4 = vector.broadcast %3 : vector<1x16xf32> to vector<128x16xf32>
    %5 = arith.mulf %2, %4 : vector<128x16xf32>
    %c0_5 = arith.constant 0 : index
    %c0_6 = arith.constant 0 : index
    %6 = vector.load %arg6[%c0_5, %c0_6] : memref<1x16xf32, #tpu.memory_space<vmem>>, vector<1x16xf32>
    %7 = vector.broadcast %6 : vector<1x16xf32> to vector<128x16xf32>
    %8 = arith.addf %5, %7 : vector<128x16xf32>
    %c0_7 = arith.constant 0 : index
    %c0_8 = arith.constant 0 : index
    %9 = vector.load %arg2[%c0_7, %c0_8] : memref<128x4xbf16, #tpu.memory_space<vmem>>, vector<128x4xbf16>
    %c0_9 = arith.constant 0 : index
    %c0_10 = arith.constant 0 : index
    %10 = vector.load %arg4[%c0_9, %c0_10] : memref<4x16xbf16, #tpu.memory_space<vmem>>, vector<4x16xbf16>
    %cst_11 = arith.constant dense<0.000000e+00> : vector<128x16xf32>
    %11 = tpu.matmul %9, %10, %cst_11 {dimension_numbers = #tpu.dot_dimension_numbers<[1], [0], [0], [1], [0, 0, 1, 1], [], []>} : vector<128x4xbf16>, vector<4x16xbf16>, vector<128x16xf32> -> vector<128x16xf32>
    %c0_12 = arith.constant 0 : index
    %c0_13 = arith.constant 0 : index
    %12 = vector.load %arg7[%c0_12, %c0_13] : memref<1x16xf32, #tpu.memory_space<vmem>>, vector<1x16xf32>
    %13 = vector.broadcast %12 : vector<1x16xf32> to vector<128x16xf32>
    %14 = arith.mulf %11, %13 : vector<128x16xf32>
    %c0_14 = arith.constant 0 : index
    %c0_15 = arith.constant 0 : index
    %15 = vector.load %arg8[%c0_14, %c0_15] : memref<1x16xf32, #tpu.memory_space<vmem>>, vector<1x16xf32>
    %16 = vector.broadcast %15 : vector<1x16xf32> to vector<128x16xf32>
    %17 = arith.addf %14, %16 : vector<128x16xf32>
    %18 = arith.addf %8, %17 : vector<128x16xf32>
    %cst_16 = arith.constant 0.000000e+00 : f32
    %19 = vector.broadcast %cst_16 : f32 to vector<128x16xf32>
    %20 = arith.maximumf %18, %19 : vector<128x16xf32>
    %c0_17 = arith.constant 0 : index
    %c0_18 = arith.constant 0 : index
    %21 = vector.load %arg9[%c0_17, %c0_18] : memref<128x16xf32, #tpu.memory_space<vmem>>, vector<128x16xf32>
    tpu.vector_store %arg9[%c0_17, %c0_18], %20 {strides = array<i32>} : memref<128x16xf32, #tpu.memory_space<vmem>>, vector<128x16xf32>,
    return
  }
  func.func @transform_0(%arg0: i32) -> (i32, i32) {
    %c0_i32 = arith.constant 0 : i32
    %c0_i32_0 = arith.constant 0 : i32
    return %arg0, %c0_i32 : i32, i32
  }
  func.func @transform_1(%arg0: i32) -> (i32, i32) {
    %c0_i32 = arith.constant 0 : i32
    %c0_i32_0 = arith.constant 0 : i32
    return %arg0, %c0_i32 : i32, i32
  }
  func.func @transform_2(%arg0: i32) -> (i32, i32) {
    %c0_i32 = arith.constant 0 : i32
    %c0_i32_0 = arith.constant 0 : i32
    %c0_i32_1 = arith.constant 0 : i32
    return %c0_i32, %c0_i32_0 : i32, i32
  }
  func.func @transform_3(%arg0: i32) -> (i32, i32) {
    %c0_i32 = arith.constant 0 : i32
    %c0_i32_0 = arith.constant 0 : i32
    %c0_i32_1 = arith.constant 0 : i32
    return %c0_i32, %c0_i32_0 : i32, i32
  }
  func.func @transform_4(%arg0: i32) -> (i32, i32) {
    %c0_i32 = arith.constant 0 : i32
    %c0_i32_0 = arith.constant 0 : i32
    %c0_i32_1 = arith.constant 0 : i32
    return %c0_i32, %c0_i32_0 : i32, i32
  }
  func.func @transform_5(%arg0: i32) -> (i32, i32) {
    %c0_i32 = arith.constant 0 : i32
    %c0_i32_0 = arith.constant 0 : i32
    %c0_i32_1 = arith.constant 0 : i32
    return %c0_i32, %c0_i32_0 : i32, i32
  }
  func.func @transform_6(%arg0: i32) -> (i32, i32) {
    %c0_i32 = arith.constant 0 : i32
    %c0_i32_0 = arith.constant 0 : i32
    %c0_i32_1 = arith.constant 0 : i32
    return %c0_i32, %c0_i32_0 : i32, i32
  }
  func.func @transform_7(%arg0: i32) -> (i32, i32) {
    %c0_i32 = arith.constant 0 : i32
    %c0_i32_0 = arith.constant 0 : i32
    %c0_i32_1 = arith.constant 0 : i32
    return %c0_i32, %c0_i32_0 : i32, i32
  }
  func.func @transform_8(%arg0: i32) -> (i32, i32) {
    %c0_i32 = arith.constant 0 : i32
    %c0_i32_0 = arith.constant 0 : i32
    return %arg0, %c0_i32 : i32, i32
  }
}

</mosaic_0001>

<llo_original>
// kernel: conv_block_forward.4
$region0: #{conv_block_forward.4}
  #allocation0 [shape = 'u32[]', space=smem, size = 0x4, offset = 0x4, fixed_abs, tag = 'smem constant byte address 0x4 - core index']
  #allocation1 [shape = 'u32[144,128]{1,0:T(1,128)}', space=vmem, size = 0x12000, scoped, tag = 'internal scratch']
  %s0 = inlined_call_operand.vmem [shape: bf16[2,10,10,4], index: 0, kind: input, shape index: {}, may-alias: {0,1,2}]
  %s1 = inlined_call_operand.vmem [shape: bf16[2,10,10,4], index: 1, kind: input, shape index: {}, may-alias: {0,1,2}]
  %s2 = inlined_call_operand.vmem [shape: bf16[2,10,10,4], index: 2, kind: input, shape index: {}, may-alias: {0,1,2}]
  %s3 = inlined_call_operand.vmem [shape: bf16[9,4,8], index: 3, kind: input, shape index: {}]
  %s4 = inlined_call_operand.vmem [shape: f32[1,8], index: 4, kind: input, shape index: {}]
  %s5 = inlined_call_operand.vmem [shape: f32[1,8], index: 5, kind: input, shape index: {}]
  %s6 = inlined_call_operand.vmem [shape: bf16[2,8,8,8], index: 6, kind: output, shape index: {}]
  %s7 = sld [smem:[#allocation0]]
  $region57: #{conv_block_forward.4} parent=0
    _
  %s9 = ssub.s32 1, %s7
  %s10 = scalar_select 0, %s9, %s7
  loop: start=0, step=1, limit=18
  $region2: #{conv_block_forward.4} parent=0 // loop_pre_header
    _
  $region3: #{conv_block_forward.4} parent=0 // loop_header
    %s12 = sphi 0, %s16
    %p13 = scmp.ge.s32.totalorder %s12, 18
    %s19 = sphi 0, %s31
    %s20 = sphi 0, %s27
    %s21 = sphi 0, %s19
    %s22 = sphi 0, %s20
    %s23 = sphi 0, %s21
    %s24 = sphi 0, %s22
    %s36 = sphi 0, %s38
    %s39 = sphi 0, %s36
    %s40 = sphi 0, %s39
    %s56 = sphi 0, %s40
    %s66 = sphi 0, %s68
    %s69 = sphi 0, %s66
    %s70 = sphi 0, %s69
    %s86 = sphi 0, %s70
    %s96 = sphi 0, %s98
    %s99 = sphi 0, %s96
    %s100 = sphi 0, %s99
    %s116 = sphi 0, %s100
    %s120 = sphi 0, %s120
    %s122 = sphi 0, %s120
    %s123 = sphi 0, %s122
    %s137 = sphi 0, %s123
    %s141 = sphi 0, %s141
    %s143 = sphi 0, %s141
    %s144 = sphi 0, %s143
    %s158 = sphi 0, %s144
    %s162 = sphi 0, %s162
    %s164 = sphi 0, %s162
    %s165 = sphi 0, %s164
    %s179 = sphi 0, %s165
    %s187 = sphi 0, %s189
    %s190 = sphi 0, %s187
    %s191 = sphi 0, %s190
    %s207 = sphi 0, %s191
  $region4: #{conv_block_forward.4} parent=0 // loop_header_branch
    %15 = sbr.rel (%p13) target = $region8
  $region5: #{conv_block_forward.4} parent=0 // loop_body
    %s17 = ssub.s32 %s12, 1
    %s18 = ssub.s32 %s12, 2
    %s25 = sadd.s32 1, %s20
    %p26 = scmp.ge.s32.totalorder %s25, 8
    %s27 = scalar_select %p26, 0, %s25
    %s28 = sadd.s32 1, %s19
    %s29 = scalar_select %p26, %s28, %s19
    %p30 = scmp.ge.s32.totalorder %s29, 2
    %s31 = scalar_select %p30, 0, %s29
    %s32 = ssub.s32 %s19, %s31
    %s33 = ssub.s32 %s20, %s27
    %s34 = sor.u32 %s32, %s33
    %p35 = scmp.eq.s32.totalorder %s34, 0
    %s37 = sadd.s32 %s36, 1
    %s38 = scalar_select %p35, %s36, %s37
    %p41 = pneg %p35
    %p42 = scmp.eq.s32.totalorder %s12, 15
    %p43 = por %p41, %p42
    %p44 = scmp.ne.s32.totalorder %s36, %s39
    %p45 = scmp.eq.s32.totalorder %s12, 0
    %p46 = por %p44, %p45
    %p47 = scmp.ne.s32.totalorder %s36, %s39
    %p48 = scmp.eq.s32.totalorder %s17, 15
    %p49 = por %p47, %p48
    %p50 = scmp.ne.s32.totalorder %s39, %s40
    %p51 = scmp.eq.s32.totalorder %s17, 0
    %p52 = por %p50, %p51
    %p53 = scmp.ne.s32.totalorder %s39, %s40
    %p54 = scmp.eq.s32.totalorder %s18, 15
    %p55 = por %p53, %p54
    %p57 = scmp.ne.s32.totalorder %s40, %s56
    %p58 = scmp.eq.s32.totalorder %s18, 0
    %p59 = por %p57, %p58
    %s60 = sadd.s32 %s20, 1
    %s61 = sadd.s32 %s27, 1
    %s62 = ssub.s32 %s19, %s31
    %s63 = ssub.s32 %s60, %s61
    %s64 = sor.u32 %s62, %s63
    %p65 = scmp.eq.s32.totalorder %s64, 0
    %s67 = sadd.s32 %s66, 1
    %s68 = scalar_select %p65, %s66, %s67
    %p71 = pneg %p65
    %p72 = scmp.eq.s32.totalorder %s12, 15
    %p73 = por %p71, %p72
    %p74 = scmp.ne.s32.totalorder %s66, %s69
    %p75 = scmp.eq.s32.totalorder %s12, 0
    %p76 = por %p74, %p75
    %p77 = scmp.ne.s32.totalorder %s66, %s69
    %p78 = scmp.eq.s32.totalorder %s17, 15
    %p79 = por %p77, %p78
    %p80 = scmp.ne.s32.totalorder %s69, %s70
    %p81 = scmp.eq.s32.totalorder %s17, 0
    %p82 = por %p80, %p81
    %p83 = scmp.ne.s32.totalorder %s69, %s70
    %p84 = scmp.eq.s32.totalorder %s18, 15
    %p85 = por %p83, %p84
    %p87 = scmp.ne.s32.totalorder %s70, %s86
    %p88 = scmp.eq.s32.totalorder %s18, 0
    %p89 = por %p87, %p88
    %s90 = sadd.s32 %s20, 2
    %s91 = sadd.s32 %s27, 2
    %s92 = ssub.s32 %s19, %s31
    %s93 = ssub.s32 %s90, %s91
    %s94 = sor.u32 %s92, %s93
    %p95 = scmp.eq.s32.totalorder %s94, 0
    %s97 = sadd.s32 %s96, 1
    %s98 = scalar_select %p95, %s96, %s97
    %p101 = pneg %p95
    %p102 = scmp.eq.s32.totalorder %s12, 15
    %p103 = por %p101, %p102
    %p104 = scmp.ne.s32.totalorder %s96, %s99
    %p105 = scmp.eq.s32.totalorder %s12, 0
    %p106 = por %p104, %p105
    %p107 = scmp.ne.s32.totalorder %s96, %s99
    %p108 = scmp.eq.s32.totalorder %s17, 15
    %p109 = por %p107, %p108
    %p110 = scmp.ne.s32.totalorder %s99, %s100
    %p111 = scmp.eq.s32.totalorder %s17, 0
    %p112 = por %p110, %p111
    %p113 = scmp.ne.s32.totalorder %s99, %s100
    %p114 = scmp.eq.s32.totalorder %s18, 15
    %p115 = por %p113, %p114
    %p117 = scmp.ne.s32.totalorder %s100, %s116
    %p118 = scmp.eq.s32.totalorder %s18, 0
    %p119 = por %p117, %p118
    %s121 = sadd.s32 %s120, 1
    %p124 = scmp.eq.s32.totalorder %s12, 15
    %p125 = scmp.ne.s32.totalorder %s120, %s122
    %p126 = scmp.eq.s32.totalorder %s12, 0
    %p127 = por %p125, %p126
    %p128 = scmp.ne.s32.totalorder %s120, %s122
    %p129 = scmp.eq.s32.totalorder %s17, 15
    %p130 = por %p128, %p129
    %p131 = scmp.ne.s32.totalorder %s122, %s123
    %p132 = scmp.eq.s32.totalorder %s17, 0
    %p133 = por %p131, %p132
    %p134 = scmp.ne.s32.totalorder %s122, %s123
    %p135 = scmp.eq.s32.totalorder %s18, 15
    %p136 = por %p134, %p135
    %p138 = scmp.ne.s32.totalorder %s123, %s137
    %p139 = scmp.eq.s32.totalorder %s18, 0
    %p140 = por %p138, %p139
    %s142 = sadd.s32 %s141, 1
    %p145 = scmp.eq.s32.totalorder %s12, 15
    %p146 = scmp.ne.s32.totalorder %s141, %s143
    %p147 = scmp.eq.s32.totalorder %s12, 0
    %p148 = por %p146, %p147
    %p149 = scmp.ne.s32.totalorder %s141, %s143
    %p150 = scmp.eq.s32.totalorder %s17, 15
    %p151 = por %p149, %p150
    %p152 = scmp.ne.s32.totalorder %s143, %s144
    %p153 = scmp.eq.s32.totalorder %s17, 0
    %p154 = por %p152, %p153
    %p155 = scmp.ne.s32.totalorder %s143, %s144
    %p156 = scmp.eq.s32.totalorder %s18, 15
    %p157 = por %p155, %p156
    %p159 = scmp.ne.s32.totalorder %s144, %s158
    %p160 = scmp.eq.s32.totalorder %s18, 0
    %p161 = por %p159, %p160
    %s163 = sadd.s32 %s162, 1
    %p166 = scmp.eq.s32.totalorder %s12, 15
    %p167 = scmp.ne.s32.totalorder %s162, %s164
    %p168 = scmp.eq.s32.totalorder %s12, 0
    %p169 = por %p167, %p168
    %p170 = scmp.ne.s32.totalorder %s162, %s164
    %p171 = scmp.eq.s32.totalorder %s17, 15
    %p172 = por %p170, %p171
    %p173 = scmp.ne.s32.totalorder %s164, %s165
    %p174 = scmp.eq.s32.totalorder %s17, 0
    %p175 = por %p173, %p174
    %p176 = scmp.ne.s32.totalorder %s164, %s165
    %p177 = scmp.eq.s32.totalorder %s18, 15
    %p178 = por %p176, %p177
    %p180 = scmp.ne.s32.totalorder %s165, %s179
    %p181 = scmp.eq.s32.totalorder %s18, 0
    %p182 = por %p180, %p181
    %s183 = ssub.s32 %s19, %s31
    %s184 = ssub.s32 %s20, %s27
    %s185 = sor.u32 %s183, %s184
    %p186 = scmp.eq.s32.totalorder %s185, 0
    %s188 = sadd.s32 %s187, 1
    %s189 = scalar_select %p186, %s187, %s188
    %p192 = pneg %p186
    %p193 = scmp.eq.s32.totalorder %s12, 15
    %p194 = por %p192, %p193
    %p195 = scmp.ne.s32.totalorder %s187, %s190
    %p196 = scmp.eq.s32.totalorder %s12, 0
    %p197 = por %p195, %p196
    %p198 = scmp.ne.s32.totalorder %s187, %s190
    %p199 = scmp.eq.s32.totalorder %s17, 15
    %p200 = por %p198, %p199
    %p201 = scmp.ne.s32.totalorder %s190, %s191
    %p202 = scmp.eq.s32.totalorder %s17, 0
    %p203 = por %p201, %p202
    %p204 = scmp.ne.s32.totalorder %s190, %s191
    %p205 = scmp.eq.s32.totalorder %s18, 15
    %p206 = por %p204, %p205
    %p208 = scmp.ne.s32.totalorder %s191, %s207
    %p209 = scmp.eq.s32.totalorder %s18, 0
    %p210 = por %p208, %p209
    %p211 = scmp.le.s32.totalorder 1, %s12
    %p212 = scmp.lt.s32.totalorder %s12, 17
    %p213 = pnand %p211, %p212
    %p214 = pneg %p213
    // Predicated region
    $region9: #{conv_block_forward.4} parent=5 // pred_check
      _
    $region10: #{conv_block_forward.4} parent=5 // pred_check_branch
      %216 = sbr.rel (%p213) target = $region12
    $region11: #{conv_block_forward.4} parent=5 // pred_region
      %s217 = ssub.s32 %s12, 1
      // Predicated region
      $region13: #{conv_block_forward.4} parent=11 // pred_check
        %p218 = pneg %p133
      $region14: #{conv_block_forward.4} parent=11 // pred_check_branch
        %220 = sbr.rel (%p218) target = $region16
      $region15: #{conv_block_forward.4} parent=11 // pred_region
        _
      $region16: #{conv_block_forward.4} parent=11 // pred_fallthru
        _
      // Predicated region
      $region17: #{conv_block_forward.4} parent=11 // pred_check
        %p221 = pneg %p154
      $region18: #{conv_block_forward.4} parent=11 // pred_check_branch
        %223 = sbr.rel (%p221) target = $region20
      $region19: #{conv_block_forward.4} parent=11 // pred_region
        _
      $region20: #{conv_block_forward.4} parent=11 // pred_fallthru
        _
      // Predicated region
      $region21: #{conv_block_forward.4} parent=11 // pred_check
        %p224 = pneg %p175
      $region22: #{conv_block_forward.4} parent=11 // pred_check_branch
        %226 = sbr.rel (%p224) target = $region24
      $region23: #{conv_block_forward.4} parent=11 // pred_region
        _
      $region24: #{conv_block_forward.4} parent=11 // pred_fallthru
        _
    $region12: #{conv_block_forward.4} parent=5 // pred_fallthru
      _
    %p227 = scmp.lt.s32.totalorder %s12, 16
    // Predicated region
    $region25: #{conv_block_forward.4} parent=5 // pred_check
      %p228 = pneg %p227
    $region26: #{conv_block_forward.4} parent=5 // pred_check_branch
      %230 = sbr.rel (%p228) target = $region28
    $region27: #{conv_block_forward.4} parent=5 // pred_region
      // Predicated region
      $region29: #{conv_block_forward.4} parent=27 // pred_check
        %p231 = pneg %p46
      $region30: #{conv_block_forward.4} parent=27 // pred_check_branch
        %233 = sbr.rel (%p231) target = $region32
      $region31: #{conv_block_forward.4} parent=27 // pred_region
        %p234 = scmp.lt.s32.totalorder %s19, 1
        %s235 = scalar_select %p234, %s19, 1
        %p236 = scmp.lt.s32.totalorder %s20, 9
        %s237 = scalar_select %p236, %s20, 9
        %s238 = smul.addr %s237, 2
        %s239 = smul.addr %s235, 20
        %s240 = sadd.s32 %s238, %s239
        %s241 = smul.addr %s240, 4
        %s242 = scalar_lea.vmem %s0, %s241
      $region32: #{conv_block_forward.4} parent=27 // pred_fallthru
        _
      // Predicated region
      $region33: #{conv_block_forward.4} parent=27 // pred_check
        %p243 = pneg %p76
      $region34: #{conv_block_forward.4} parent=27 // pred_check_branch
        %245 = sbr.rel (%p243) target = $region36
      $region35: #{conv_block_forward.4} parent=27 // pred_region
        %s246 = sadd.s32 %s20, 1
        %p247 = scmp.lt.s32.totalorder %s19, 1
        %s248 = scalar_select %p247, %s19, 1
        %p249 = scmp.lt.s32.totalorder %s246, 9
        %s250 = scalar_select %p249, %s246, 9
        %s251 = smul.addr %s250, 2
        %s252 = smul.addr %s248, 20
        %s253 = sadd.s32 %s251, %s252
        %s254 = smul.addr %s253, 4
        %s255 = scalar_lea.vmem %s1, %s254
        %s256 = sadd.s32 %s20, 1
      $region36: #{conv_block_forward.4} parent=27 // pred_fallthru
        _
      // Predicated region
      $region37: #{conv_block_forward.4} parent=27 // pred_check
        %p257 = pneg %p106
      $region38: #{conv_block_forward.4} parent=27 // pred_check_branch
        %259 = sbr.rel (%p257) target = $region40
      $region39: #{conv_block_forward.4} parent=27 // pred_region
        %s260 = sadd.s32 %s20, 2
        %p261 = scmp.lt.s32.totalorder %s19, 1
        %s262 = scalar_select %p261, %s19, 1
        %p263 = scmp.lt.s32.totalorder %s260, 9
        %s264 = scalar_select %p263, %s260, 9
        %s265 = smul.addr %s264, 2
        %s266 = smul.addr %s262, 20
        %s267 = sadd.s32 %s265, %s266
        %s268 = smul.addr %s267, 4
        %s269 = scalar_lea.vmem %s2, %s268
        %s270 = sadd.s32 %s20, 2
      $region40: #{conv_block_forward.4} parent=27 // pred_fallthru
        _
    $region28: #{conv_block_forward.4} parent=5 // pred_fallthru
      _
    %p271 = scmp.le.s32.totalorder 1, %s12
    %p272 = scmp.lt.s32.totalorder %s12, 17
    %p273 = pnand %p271, %p272
    %p274 = pneg %p273
    // Predicated region
    $region41: #{conv_block_forward.4} parent=5 // pred_check
      _
    $region42: #{conv_block_forward.4} parent=5 // pred_check_branch
      %276 = sbr.rel (%p273) target = $region44
    $region43: #{conv_block_forward.4} parent=5 // pred_region
      %s277 = ssub.s32 %s12, 1
      %p278 = scmp.lt.s32.totalorder %s21, 1
      %s279 = scalar_select %p278, %s21, 1
      %p280 = scmp.lt.s32.totalorder %s22, 9
      %s281 = scalar_select %p280, %s22, 9
      %s282 = smul.addr %s281, 2
      %s283 = smul.addr %s279, 20
      %s284 = sadd.s32 %s282, %s283
      %s285 = smul.addr %s284, 4
      %s286 = scalar_lea.vmem %s0, %s285
      %p287 = pneg %p52
      %p288 = pneg %p49
      %s289 = sadd.s32 %s22, 1
      %p290 = scmp.lt.s32.totalorder %s21, 1
      %s291 = scalar_select %p290, %s21, 1
      %p292 = scmp.lt.s32.totalorder %s289, 9
      %s293 = scalar_select %p292, %s289, 9
      %s294 = smul.addr %s293, 2
      %s295 = smul.addr %s291, 20
      %s296 = sadd.s32 %s294, %s295
      %s297 = smul.addr %s296, 4
      %s298 = scalar_lea.vmem %s1, %s297
      %p299 = pneg %p82
      %p300 = pneg %p79
      %s301 = sadd.s32 %s22, 2
      %p302 = scmp.lt.s32.totalorder %s21, 1
      %s303 = scalar_select %p302, %s21, 1
      %p304 = scmp.lt.s32.totalorder %s301, 9
      %s305 = scalar_select %p304, %s301, 9
      %s306 = smul.addr %s305, 2
      %s307 = smul.addr %s303, 20
      %s308 = sadd.s32 %s306, %s307
      %s309 = smul.addr %s308, 4
      %s310 = scalar_lea.vmem %s2, %s309
      %p311 = pneg %p112
      %p312 = pneg %p109
      %p313 = pneg %p133
      %p314 = pneg %p130
      %p315 = pneg %p154
      %p316 = pneg %p151
      %p317 = pneg %p175
      %p318 = pneg %p172
      %p319 = pneg %p203
      %p320 = pneg %p200
      %p321 = scmp.lt.s32.totalorder %s21, 1
      %s322 = scalar_select %p321, %s21, 1
      %p323 = scmp.lt.s32.totalorder %s22, 7
      %s324 = scalar_select %p323, %s22, 7
      %s325 = smul.addr %s322, 8
      %s326 = sadd.s32 %s324, %s325
      %s327 = smul.addr %s326, 4
      %s328 = scalar_lea.vmem %s6, %s327
      %p329 = scmp.lt.s32.totalorder %s21, 1
      %s330 = scalar_select %p329, %s21, 1
      %p331 = scmp.lt.s32.totalorder %s22, 9
      %s332 = scalar_select %p331, %s22, 9
      %s333 = smul.addr %s332, 2
      %s334 = smul.addr %s330, 20
      %s335 = sadd.s32 %s333, %s334
      %s336 = smul.addr %s335, 4
      %s337 = scalar_lea.vmem %s0, %s336
      %s338 = sadd.s32 %s22, 1
      %p339 = scmp.lt.s32.totalorder %s21, 1
      %s340 = scalar_select %p339, %s21, 1
      %p341 = scmp.lt.s32.totalorder %s338, 9
      %s342 = scalar_select %p341, %s338, 9
      %s343 = smul.addr %s342, 2
      %s344 = smul.addr %s340, 20
      %s345 = sadd.s32 %s343, %s344
      %s346 = smul.addr %s345, 4
      %s347 = scalar_lea.vmem %s1, %s346
      %s348 = sadd.s32 %s22, 1
      %s349 = sadd.s32 %s22, 2
      %p350 = scmp.lt.s32.totalorder %s21, 1
      %s351 = scalar_select %p350, %s21, 1
      %p352 = scmp.lt.s32.totalorder %s349, 9
      %s353 = scalar_select %p352, %s349, 9
      %s354 = smul.addr %s353, 2
      %s355 = smul.addr %s351, 20
      %s356 = sadd.s32 %s354, %s355
      %s357 = smul.addr %s356, 4
      %s358 = scalar_lea.vmem %s2, %s357
      %s359 = sadd.s32 %s22, 2
      %p360 = scmp.lt.s32.totalorder %s21, 1
      %s361 = scalar_select %p360, %s21, 1
      %p362 = scmp.lt.s32.totalorder %s22, 7
      %s363 = scalar_select %p362, %s22, 7
      %s364 = smul.addr %s361, 8
      %s365 = sadd.s32 %s363, %s364
      %s366 = smul.addr %s365, 4
      %s367 = scalar_lea.vmem %s6, %s366
      %v369 = vld [vmem:[%s337] sm:$0xf]
      %v370 = vld [vmem:[%s337 + $0x4] sm:$0x1]
      %v371 = vld [vmem:[%s3] sm:$0x3]
      %s372 = scalar_lea.vmem %s3, 2
      %v373 = vld [vmem:[%s372] sm:$0x3]
      %v376 = vunpack.c.l.b16 %v369
      %v377 = vunpack.c.l.b16 %v370
      %v378 = vpack.c.b16 %v377, %v376
      %v380 = vshrl.u32 %v378, 16
      %v382 = vshll.u32 %v378, 16
      %v384 = vrot.slane %v382, 1
      %v385 = vor.u32 %v380, %v384
      %vm386 = vcmask 31744
      %v388 = vsel %vm386, %v385, 0
      %vm390 = vcmask 1041408
      %v392 = vsel %vm390, %v373, 0
      %394 = vmatprep.subr.bf16.mxu0 0
      %395 = vmatpush1.bf16.msra.mxu0 %v392
      %396 = vmatprep.subr.bf16.mxu0 0
      %397 = vmatpush1.bf16.msra.mxu0 0
      %398 = vmatprep.subr.bf16.mxu0 0
      %399 = vmatpush1.bf16.msra.mxu0 0
      %400 = vmatprep.subr.bf16.mxu0 0
      %401 = vmatpush1.bf16.msra.mxu0 0
      %402 = vmatprep.subr.bf16.mxu0 0
      %403 = vmatpush1.bf16.msra.mxu0 0
      %404 = vmatprep.subr.bf16.mxu0 0
      %405 = vmatpush1.bf16.msra.mxu0 0
      %406 = vmatprep.subr.bf16.mxu0 0
      %407 = vmatpush1.bf16.msra.mxu0 0
      %408 = vmatprep.subr.bf16.mxu0 0
      %409 = vmatpush1.bf16.msra.mxu0 0
      %410 = vmatprep.subr.bf16.mxu0 0
      %411 = vmatpush1.bf16.msra.mxu0 0
      %412 = vmatprep.subr.bf16.mxu0 0
      %413 = vmatpush1.bf16.msra.mxu0 0
      %414 = vmatprep.subr.bf16.mxu0 0
      %415 = vmatpush1.bf16.msra.mxu0 0
      %416 = vmatprep.subr.bf16.mxu0 0
      %417 = vmatpush1.bf16.msra.mxu0 0
      %418 = vmatprep.subr.bf16.mxu0 0
      %419 = vmatpush1.bf16.msra.mxu0 0
      %420 = vmatprep.subr.bf16.mxu0 0
      %421 = vmatpush1.bf16.msra.mxu0 0
      %422 = vmatprep.subr.bf16.mxu0 0
      %423 = vmatpush1.bf16.msra.mxu0 0
      %424 = vmatprep.subr.bf16.mxu0 0
      %425 = vmatpush1.bf16.msra.mxu0 0
      %426 = vmatprep.mubr.bf16.mxu0 0
      %427 = vmatmul.mubr.bf16.gmra.mrb[0].mxu0 %v388
      %v428 = vpop.f32.mrb[0].mxu0
      %v429 = vadd.f32 0.0, %v428
      %v430 = vpop.f32.mrb[0].mxu0
      %v431 = vpop.f32.mrb[0].mxu0
      %v432 = vpop.f32.mrb[0].mxu0
      %433 = vdwg.mxu0
      %v435 = vsel %vm386, %v369, 0
      %v438 = vsel %vm390, %v371, 0
      %440 = vmatprep.subr.bf16.mxu0 0
      %441 = vmatpush1.bf16.msra.mxu0 %v438
      %442 = vmatprep.subr.bf16.mxu0 0
      %443 = vmatpush1.bf16.msra.mxu0 0
      %444 = vmatprep.subr.bf16.mxu0 0
      %445 = vmatpush1.bf16.msra.mxu0 0
      %446 = vmatprep.subr.bf16.mxu0 0
      %447 = vmatpush1.bf16.msra.mxu0 0
      %448 = vmatprep.subr.bf16.mxu0 0
      %449 = vmatpush1.bf16.msra.mxu0 0
      %450 = vmatprep.subr.bf16.mxu0 0
      %451 = vmatpush1.bf16.msra.mxu0 0
      %452 = vmatprep.subr.bf16.mxu0 0
      %453 = vmatpush1.bf16.msra.mxu0 0
      %454 = vmatprep.subr.bf16.mxu0 0
      %455 = vmatpush1.bf16.msra.mxu0 0
      %456 = vmatprep.subr.bf16.mxu0 0
      %457 = vmatpush1.bf16.msra.mxu0 0
      %458 = vmatprep.subr.bf16.mxu0 0
      %459 = vmatpush1.bf16.msra.mxu0 0
      %460 = vmatprep.subr.bf16.mxu0 0
      %461 = vmatpush1.bf16.msra.mxu0 0
      %462 = vmatprep.subr.bf16.mxu0 0
      %463 = vmatpush1.bf16.msra.mxu0 0
      %464 = vmatprep.subr.bf16.mxu0 0
      %465 = vmatpush1.bf16.msra.mxu0 0
      %466 = vmatprep.subr.bf16.mxu0 0
      %467 = vmatpush1.bf16.msra.mxu0 0
      %468 = vmatprep.subr.bf16.mxu0 0
      %469 = vmatpush1.bf16.msra.mxu0 0
      %470 = vmatprep.subr.bf16.mxu0 0
      %471 = vmatpush1.bf16.msra.mxu0 0
      %472 = vmatprep.mubr.bf16.mxu0 0
      %473 = vmatmul.mubr.bf16.gmra.mrb[0].mxu0 %v435
      %v474 = vpop.f32.mrb[0].mxu0
      %v475 = vadd.f32 %v429, %v474
      %v476 = vpop.f32.mrb[0].mxu0
      %v477 = vpop.f32.mrb[0].mxu0
      %v478 = vpop.f32.mrb[0].mxu0
      %479 = vdwg.mxu0
      %s480 = scalar_lea.vmem %s3, 4
      %v481 = vld [vmem:[%s480] sm:$0x3]
      %v482 = vrot.slane %v378, 1
      %v484 = vsel %vm386, %v482, 0
      %v487 = vsel %vm390, %v481, 0
      %489 = vmatprep.subr.bf16.mxu0 0
      %490 = vmatpush1.bf16.msra.mxu0 %v487
      %491 = vmatprep.subr.bf16.mxu0 0
      %492 = vmatpush1.bf16.msra.mxu0 0
      %493 = vmatprep.subr.bf16.mxu0 0
      %494 = vmatpush1.bf16.msra.mxu0 0
      %495 = vmatprep.subr.bf16.mxu0 0
      %496 = vmatpush1.bf16.msra.mxu0 0
      %497 = vmatprep.subr.bf16.mxu0 0
      %498 = vmatpush1.bf16.msra.mxu0 0
      %499 = vmatprep.subr.bf16.mxu0 0
      %500 = vmatpush1.bf16.msra.mxu0 0
      %501 = vmatprep.subr.bf16.mxu0 0
      %502 = vmatpush1.bf16.msra.mxu0 0
      %503 = vmatprep.subr.bf16.mxu0 0
      %504 = vmatpush1.bf16.msra.mxu0 0
      %505 = vmatprep.subr.bf16.mxu0 0
      %506 = vmatpush1.bf16.msra.mxu0 0
      %507 = vmatprep.subr.bf16.mxu0 0
      %508 = vmatpush1.bf16.msra.mxu0 0
      %509 = vmatprep.subr.bf16.mxu0 0
      %510 = vmatpush1.bf16.msra.mxu0 0
      %511 = vmatprep.subr.bf16.mxu0 0
      %512 = vmatpush1.bf16.msra.mxu0 0
      %513 = vmatprep.subr.bf16.mxu0 0
      %514 = vmatpush1.bf16.msra.mxu0 0
      %515 = vmatprep.subr.bf16.mxu0 0
      %516 = vmatpush1.bf16.msra.mxu0 0
      %517 = vmatprep.subr.bf16.mxu0 0
      %518 = vmatpush1.bf16.msra.mxu0 0
      %519 = vmatprep.subr.bf16.mxu0 0
      %520 = vmatpush1.bf16.msra.mxu0 0
      %521 = vmatprep.mubr.bf16.mxu0 0
      %522 = vmatmul.mubr.bf16.gmra.mrb[0].mxu0 %v484
      %v523 = vpop.f32.mrb[0].mxu0
      %v524 = vadd.f32 0.0, %v523
      %v525 = vpop.f32.mrb[0].mxu0
      %v526 = vpop.f32.mrb[0].mxu0
      %v527 = vpop.f32.mrb[0].mxu0
      %528 = vdwg.mxu0
      %v529 = vadd.f32 %v475, %v524
      %v530 = vld [vmem:[%s347] sm:$0xf]
      %v531 = vld [vmem:[%s347 + $0x4] sm:$0x1]
      %s532 = scalar_lea.vmem %s3, 6
      %v533 = vld [vmem:[%s532] sm:$0x3]
      %v535 = vsel %vm386, %v530, 0
      %v538 = vsel %vm390, %v533, 0
      %540 = vmatprep.subr.bf16.mxu0 0
      %541 = vmatpush1.bf16.msra.mxu0 %v538
      %542 = vmatprep.subr.bf16.mxu0 0
      %543 = vmatpush1.bf16.msra.mxu0 0
      %544 = vmatprep.subr.bf16.mxu0 0
      %545 = vmatpush1.bf16.msra.mxu0 0
      %546 = vmatprep.subr.bf16.mxu0 0
      %547 = vmatpush1.bf16.msra.mxu0 0
      %548 = vmatprep.subr.bf16.mxu0 0
      %549 = vmatpush1.bf16.msra.mxu0 0
      %550 = vmatprep.subr.bf16.mxu0 0
      %551 = vmatpush1.bf16.msra.mxu0 0
      %552 = vmatprep.subr.bf16.mxu0 0
      %553 = vmatpush1.bf16.msra.mxu0 0
      %554 = vmatprep.subr.bf16.mxu0 0
      %555 = vmatpush1.bf16.msra.mxu0 0
      %556 = vmatprep.subr.bf16.mxu0 0
      %557 = vmatpush1.bf16.msra.mxu0 0
      %558 = vmatprep.subr.bf16.mxu0 0
      %559 = vmatpush1.bf16.msra.mxu0 0
      %560 = vmatprep.subr.bf16.mxu0 0
      %561 = vmatpush1.bf16.msra.mxu0 0
      %562 = vmatprep.subr.bf16.mxu0 0
      %563 = vmatpush1.bf16.msra.mxu0 0
      %564 = vmatprep.subr.bf16.mxu0 0
      %565 = vmatpush1.bf16.msra.mxu0 0
      %566 = vmatprep.subr.bf16.mxu0 0
      %567 = vmatpush1.bf16.msra.mxu0 0
      %568 = vmatprep.subr.bf16.mxu0 0
      %569 = vmatpush1.bf16.msra.mxu0 0
      %570 = vmatprep.subr.bf16.mxu0 0
      %571 = vmatpush1.bf16.msra.mxu0 0
      %572 = vmatprep.mubr.bf16.mxu0 0
      %573 = vmatmul.mubr.bf16.gmra.mrb[0].mxu0 %v535
      %v574 = vpop.f32.mrb[0].mxu0
      %v575 = vadd.f32 0.0, %v574
      %v576 = vpop.f32.mrb[0].mxu0
      %v577 = vpop.f32.mrb[0].mxu0
      %v578 = vpop.f32.mrb[0].mxu0
      %579 = vdwg.mxu0
      %v580 = vadd.f32 %v529, %v575
      %s581 = scalar_lea.vmem %s3, 8
      %v582 = vld [vmem:[%s581] sm:$0x3]
      %v585 = vunpack.c.l.b16 %v530
      %v586 = vunpack.c.l.b16 %v531
      %v587 = vpack.c.b16 %v586, %v585
      %v589 = vshrl.u32 %v587, 16
      %v591 = vshll.u32 %v587, 16
      %v593 = vrot.slane %v591, 1
      %v594 = vor.u32 %v589, %v593
      %v596 = vsel %vm386, %v594, 0
      %v599 = vsel %vm390, %v582, 0
      %601 = vmatprep.subr.bf16.mxu0 0
      %602 = vmatpush1.bf16.msra.mxu0 %v599
      %603 = vmatprep.subr.bf16.mxu0 0
      %604 = vmatpush1.bf16.msra.mxu0 0
      %605 = vmatprep.subr.bf16.mxu0 0
      %606 = vmatpush1.bf16.msra.mxu0 0
      %607 = vmatprep.subr.bf16.mxu0 0
      %608 = vmatpush1.bf16.msra.mxu0 0
      %609 = vmatprep.subr.bf16.mxu0 0
      %610 = vmatpush1.bf16.msra.mxu0 0
      %611 = vmatprep.subr.bf16.mxu0 0
      %612 = vmatpush1.bf16.msra.mxu0 0
      %613 = vmatprep.subr.bf16.mxu0 0
      %614 = vmatpush1.bf16.msra.mxu0 0
      %615 = vmatprep.subr.bf16.mxu0 0
      %616 = vmatpush1.bf16.msra.mxu0 0
      %617 = vmatprep.subr.bf16.mxu0 0
      %618 = vmatpush1.bf16.msra.mxu0 0
      %619 = vmatprep.subr.bf16.mxu0 0
      %620 = vmatpush1.bf16.msra.mxu0 0
      %621 = vmatprep.subr.bf16.mxu0 0
      %622 = vmatpush1.bf16.msra.mxu0 0
      %623 = vmatprep.subr.bf16.mxu0 0
      %624 = vmatpush1.bf16.msra.mxu0 0
      %625 = vmatprep.subr.bf16.mxu0 0
      %626 = vmatpush1.bf16.msra.mxu0 0
      %627 = vmatprep.subr.bf16.mxu0 0
      %628 = vmatpush1.bf16.msra.mxu0 0
      %629 = vmatprep.subr.bf16.mxu0 0
      %630 = vmatpush1.bf16.msra.mxu0 0
      %631 = vmatprep.subr.bf16.mxu0 0
      %632 = vmatpush1.bf16.msra.mxu0 0
      %633 = vmatprep.mubr.bf16.mxu0 0
      %634 = vmatmul.mubr.bf16.gmra.mrb[0].mxu0 %v596
      %v635 = vpop.f32.mrb[0].mxu0
      %v636 = vadd.f32 0.0, %v635
      %v637 = vpop.f32.mrb[0].mxu0
      %v638 = vpop.f32.mrb[0].mxu0
      %v639 = vpop.f32.mrb[0].mxu0
      %640 = vdwg.mxu0
      %v641 = vadd.f32 %v580, %v636
      %s642 = scalar_lea.vmem %s3, 10
      %v643 = vld [vmem:[%s642] sm:$0x3]
      %v644 = vrot.slane %v587, 1
      %v646 = vsel %vm386, %v644, 0
      %v649 = vsel %vm390, %v643, 0
      %651 = vmatprep.subr.bf16.mxu0 0
      %652 = vmatpush1.bf16.msra.mxu0 %v649
      %653 = vmatprep.subr.bf16.mxu0 0
      %654 = vmatpush1.bf16.msra.mxu0 0
      %655 = vmatprep.subr.bf16.mxu0 0
      %656 = vmatpush1.bf16.msra.mxu0 0
      %657 = vmatprep.subr.bf16.mxu0 0
      %658 = vmatpush1.bf16.msra.mxu0 0
      %659 = vmatprep.subr.bf16.mxu0 0
      %660 = vmatpush1.bf16.msra.mxu0 0
      %661 = vmatprep.subr.bf16.mxu0 0
      %662 = vmatpush1.bf16.msra.mxu0 0
      %663 = vmatprep.subr.bf16.mxu0 0
      %664 = vmatpush1.bf16.msra.mxu0 0
      %665 = vmatprep.subr.bf16.mxu0 0
      %666 = vmatpush1.bf16.msra.mxu0 0
      %667 = vmatprep.subr.bf16.mxu0 0
      %668 = vmatpush1.bf16.msra.mxu0 0
      %669 = vmatprep.subr.bf16.mxu0 0
      %670 = vmatpush1.bf16.msra.mxu0 0
      %671 = vmatprep.subr.bf16.mxu0 0
      %672 = vmatpush1.bf16.msra.mxu0 0
      %673 = vmatprep.subr.bf16.mxu0 0
      %674 = vmatpush1.bf16.msra.mxu0 0
      %675 = vmatprep.subr.bf16.mxu0 0
      %676 = vmatpush1.bf16.msra.mxu0 0
      %677 = vmatprep.subr.bf16.mxu0 0
      %678 = vmatpush1.bf16.msra.mxu0 0
      %679 = vmatprep.subr.bf16.mxu0 0
      %680 = vmatpush1.bf16.msra.mxu0 0
      %681 = vmatprep.subr.bf16.mxu0 0
      %682 = vmatpush1.bf16.msra.mxu0 0
      %683 = vmatprep.mubr.bf16.mxu0 0
      %684 = vmatmul.mubr.bf16.gmra.mrb[0].mxu0 %v646
      %v685 = vpop.f32.mrb[0].mxu0
      %v686 = vadd.f32 0.0, %v685
      %v687 = vpop.f32.mrb[0].mxu0
      %v688 = vpop.f32.mrb[0].mxu0
      %v689 = vpop.f32.mrb[0].mxu0
      %690 = vdwg.mxu0
      %v691 = vadd.f32 %v641, %v686
      %v692 = vld [vmem:[%s358] sm:$0xf]
      %v693 = vld [vmem:[%s358 + $0x4] sm:$0x1]
      %s694 = scalar_lea.vmem %s3, 12
      %v695 = vld [vmem:[%s694] sm:$0x3]
      %v697 = vsel %vm386, %v692, 0
      %v700 = vsel %vm390, %v695, 0
      %702 = vmatprep.subr.bf16.mxu0 0
      %703 = vmatpush1.bf16.msra.mxu0 %v700
      %704 = vmatprep.subr.bf16.mxu0 0
      %705 = vmatpush1.bf16.msra.mxu0 0
      %706 = vmatprep.subr.bf16.mxu0 0
      %707 = vmatpush1.bf16.msra.mxu0 0
      %708 = vmatprep.subr.bf16.mxu0 0
      %709 = vmatpush1.bf16.msra.mxu0 0
      %710 = vmatprep.subr.bf16.mxu0 0
      %711 = vmatpush1.bf16.msra.mxu0 0
      %712 = vmatprep.subr.bf16.mxu0 0
      %713 = vmatpush1.bf16.msra.mxu0 0
      %714 = vmatprep.subr.bf16.mxu0 0
      %715 = vmatpush1.bf16.msra.mxu0 0
      %716 = vmatprep.subr.bf16.mxu0 0
      %717 = vmatpush1.bf16.msra.mxu0 0
      %718 = vmatprep.subr.bf16.mxu0 0
      %719 = vmatpush1.bf16.msra.mxu0 0
      %720 = vmatprep.subr.bf16.mxu0 0
      %721 = vmatpush1.bf16.msra.mxu0 0
      %722 = vmatprep.subr.bf16.mxu0 0
      %723 = vmatpush1.bf16.msra.mxu0 0
      %724 = vmatprep.subr.bf16.mxu0 0
      %725 = vmatpush1.bf16.msra.mxu0 0
      %726 = vmatprep.subr.bf16.mxu0 0
      %727 = vmatpush1.bf16.msra.mxu0 0
      %728 = vmatprep.subr.bf16.mxu0 0
      %729 = vmatpush1.bf16.msra.mxu0 0
      %730 = vmatprep.subr.bf16.mxu0 0
      %731 = vmatpush1.bf16.msra.mxu0 0
      %732 = vmatprep.subr.bf16.mxu0 0
      %733 = vmatpush1.bf16.msra.mxu0 0
      %734 = vmatprep.mubr.bf16.mxu0 0
      %735 = vmatmul.mubr.bf16.gmra.mrb[0].mxu0 %v697
      %v736 = vpop.f32.mrb[0].mxu0
      %v737 = vadd.f32 0.0, %v736
      %v738 = vpop.f32.mrb[0].mxu0
      %v739 = vpop.f32.mrb[0].mxu0
      %v740 = vpop.f32.mrb[0].mxu0
      %741 = vdwg.mxu0
      %v742 = vadd.f32 %v691, %v737
      %s743 = scalar_lea.vmem %s3, 14
      %v744 = vld [vmem:[%s743] sm:$0x3]
      %v747 = vunpack.c.l.b16 %v692
      %v748 = vunpack.c.l.b16 %v693
      %v749 = vpack.c.b16 %v748, %v747
      %v751 = vshrl.u32 %v749, 16
      %v753 = vshll.u32 %v749, 16
      %v755 = vrot.slane %v753, 1
      %v756 = vor.u32 %v751, %v755
      %v758 = vsel %vm386, %v756, 0
      %v761 = vsel %vm390, %v744, 0
      %763 = vmatprep.subr.bf16.mxu0 0
      %764 = vmatpush1.bf16.msra.mxu0 %v761
      %765 = vmatprep.subr.bf16.mxu0 0
      %766 = vmatpush1.bf16.msra.mxu0 0
      %767 = vmatprep.subr.bf16.mxu0 0
      %768 = vmatpush1.bf16.msra.mxu0 0
      %769 = vmatprep.subr.bf16.mxu0 0
      %770 = vmatpush1.bf16.msra.mxu0 0
      %771 = vmatprep.subr.bf16.mxu0 0
      %772 = vmatpush1.bf16.msra.mxu0 0
      %773 = vmatprep.subr.bf16.mxu0 0
      %774 = vmatpush1.bf16.msra.mxu0 0
      %775 = vmatprep.subr.bf16.mxu0 0
      %776 = vmatpush1.bf16.msra.mxu0 0
      %777 = vmatprep.subr.bf16.mxu0 0
      %778 = vmatpush1.bf16.msra.mxu0 0
      %779 = vmatprep.subr.bf16.mxu0 0
      %780 = vmatpush1.bf16.msra.mxu0 0
      %781 = vmatprep.subr.bf16.mxu0 0
      %782 = vmatpush1.bf16.msra.mxu0 0
      %783 = vmatprep.subr.bf16.mxu0 0
      %784 = vmatpush1.bf16.msra.mxu0 0
      %785 = vmatprep.subr.bf16.mxu0 0
      %786 = vmatpush1.bf16.msra.mxu0 0
      %787 = vmatprep.subr.bf16.mxu0 0
      %788 = vmatpush1.bf16.msra.mxu0 0
      %789 = vmatprep.subr.bf16.mxu0 0
      %790 = vmatpush1.bf16.msra.mxu0 0
      %791 = vmatprep.subr.bf16.mxu0 0
      %792 = vmatpush1.bf16.msra.mxu0 0
      %793 = vmatprep.subr.bf16.mxu0 0
      %794 = vmatpush1.bf16.msra.mxu0 0
      %795 = vmatprep.mubr.bf16.mxu0 0
      %796 = vmatmul.mubr.bf16.gmra.mrb[0].mxu0 %v758
      %v797 = vpop.f32.mrb[0].mxu0
      %v798 = vadd.f32 0.0, %v797
      %v799 = vpop.f32.mrb[0].mxu0
      %v800 = vpop.f32.mrb[0].mxu0
      %v801 = vpop.f32.mrb[0].mxu0
      %802 = vdwg.mxu0
      %v803 = vadd.f32 %v742, %v798
      %s804 = scalar_lea.vmem %s3, 16
      %v805 = vld [vmem:[%s804] sm:$0x3]
      %v806 = vrot.slane %v749, 1
      %v808 = vsel %vm386, %v806, 0
      %v811 = vsel %vm390, %v805, 0
      %813 = vmatprep.subr.bf16.mxu0 0
      %814 = vmatpush1.bf16.msra.mxu0 %v811
      %815 = vmatprep.subr.bf16.mxu0 0
      %816 = vmatpush1.bf16.msra.mxu0 0
      %817 = vmatprep.subr.bf16.mxu0 0
      %818 = vmatpush1.bf16.msra.mxu0 0
      %819 = vmatprep.subr.bf16.mxu0 0
      %820 = vmatpush1.bf16.msra.mxu0 0
      %821 = vmatprep.subr.bf16.mxu0 0
      %822 = vmatpush1.bf16.msra.mxu0 0
      %823 = vmatprep.subr.bf16.mxu0 0
      %824 = vmatpush1.bf16.msra.mxu0 0
      %825 = vmatprep.subr.bf16.mxu0 0
      %826 = vmatpush1.bf16.msra.mxu0 0
      %827 = vmatprep.subr.bf16.mxu0 0
      %828 = vmatpush1.bf16.msra.mxu0 0
      %829 = vmatprep.subr.bf16.mxu0 0
      %830 = vmatpush1.bf16.msra.mxu0 0
      %831 = vmatprep.subr.bf16.mxu0 0
      %832 = vmatpush1.bf16.msra.mxu0 0
      %833 = vmatprep.subr.bf16.mxu0 0
      %834 = vmatpush1.bf16.msra.mxu0 0
      %835 = vmatprep.subr.bf16.mxu0 0
      %836 = vmatpush1.bf16.msra.mxu0 0
      %837 = vmatprep.subr.bf16.mxu0 0
      %838 = vmatpush1.bf16.msra.mxu0 0
      %839 = vmatprep.subr.bf16.mxu0 0
      %840 = vmatpush1.bf16.msra.mxu0 0
      %841 = vmatprep.subr.bf16.mxu0 0
      %842 = vmatpush1.bf16.msra.mxu0 0
      %843 = vmatprep.subr.bf16.mxu0 0
      %844 = vmatpush1.bf16.msra.mxu0 0
      %845 = vmatprep.mubr.bf16.mxu0 0
      %846 = vmatmul.mubr.bf16.gmra.mrb[0].mxu0 %v808
      %v847 = vpop.f32.mrb[0].mxu0
      %v848 = vadd.f32 0.0, %v847
      %v849 = vpop.f32.mrb[0].mxu0
      %v850 = vpop.f32.mrb[0].mxu0
      %v851 = vpop.f32.mrb[0].mxu0
      %852 = vdwg.mxu0
      %v853 = vadd.f32 %v803, %v848
      %v854 = vld [vmem:[%s4] sm:$0x1]
      %v856 = vlaneseq
      %v857 = vshrl.u32 %v856, 7
      %v858 = vsub.s32 0, %v857
      %v859 = vrot.slane %v854, %v858
      %v861 = vmul.f32 %v853, %v859
      %v862 = vld [vmem:[%s5] sm:$0x1]
      %v864 = vlaneseq
      %v865 = vshrl.u32 %v864, 7
      %v866 = vsub.s32 0, %v865
      %v867 = vrot.slane %v862, %v866
      %v869 = vadd.f32 %v861, %v867
      %v870 = vmax.f32 %v869, 0.0
      %v871 = vpack.c.bf16 %v870, %v870
      %vm872 = vcmask 60416
      %873 = vst.msk [vmem:[%s367] sm:$0xf] %vm872, %v871
      %p874 = scmp.lt.s32.totalorder %s21, 1
      %s875 = scalar_select %p874, %s21, 1
      %p876 = scmp.lt.s32.totalorder %s22, 7
      %s877 = scalar_select %p876, %s22, 7
      %s878 = smul.addr %s875, 8
      %s879 = sadd.s32 %s877, %s878
      %s880 = smul.addr %s879, 4
      %s881 = scalar_lea.vmem %s6, %s880
      // Predicated region
      $region45: #{conv_block_forward.4} parent=43 // pred_check
        %p882 = pneg %p200
      $region46: #{conv_block_forward.4} parent=43 // pred_check_branch
        %884 = sbr.rel (%p882) target = $region48
      $region47: #{conv_block_forward.4} parent=43 // pred_region
        _
      $region48: #{conv_block_forward.4} parent=43 // pred_fallthru
        _
    $region44: #{conv_block_forward.4} parent=5 // pred_fallthru
      _
    %p885 = scmp.le.s32.totalorder 2, %s12
    // Predicated region
    $region49: #{conv_block_forward.4} parent=5 // pred_check
      %p886 = pneg %p885
    $region50: #{conv_block_forward.4} parent=5 // pred_check_branch
      %888 = sbr.rel (%p886) target = $region52
    $region51: #{conv_block_forward.4} parent=5 // pred_region
      %s889 = ssub.s32 %s12, 2
      // Predicated region
      $region53: #{conv_block_forward.4} parent=51 // pred_check
        %p890 = pneg %p206
      $region54: #{conv_block_forward.4} parent=51 // pred_check_branch
        %892 = sbr.rel (%p890) target = $region56
      $region55: #{conv_block_forward.4} parent=51 // pred_region
        %p893 = scmp.lt.s32.totalorder %s23, 1
        %s894 = scalar_select %p893, %s23, 1
        %p895 = scmp.lt.s32.totalorder %s24, 7
        %s896 = scalar_select %p895, %s24, 7
        %s897 = smul.addr %s894, 8
        %s898 = sadd.s32 %s896, %s897
        %s899 = smul.addr %s898, 4
        %s900 = scalar_lea.vmem %s6, %s899
      $region56: #{conv_block_forward.4} parent=51 // pred_fallthru
        _
    $region52: #{conv_block_forward.4} parent=5 // pred_fallthru
      _
  $region6: #{conv_block_forward.4} parent=0 // loop_footer
    %s16 = sadd.s32 1, %s12
  $region7: #{conv_block_forward.4} parent=0 // loop_footer_branch
    %11 = sbr.rel target = $region3
  $region8: #{conv_block_forward.4} parent=0 // loop_exit
    _

// kernel: conv_block_forward.3
$region0: #{conv_block_forward.3}
  #allocation0 [shape = 'u32[]', space=smem, size = 0x4, offset = 0x4, fixed_abs, tag = 'smem constant byte address 0x4 - core index']
  #allocation1 [shape = 'u32[144,128]{1,0:T(1,128)}', space=vmem, size = 0x12000, scoped, tag = 'internal scratch']
  #allocation2 [shape = 'f32[128,4]{1,0:T(8,128)}', space=vmem, size = 0x10000, scoped, tag = 'scratch operand']
  %s0 = inlined_call_operand.vmem [shape: bf16[128,4], index: 0, kind: input, shape index: {}]
  %s1 = inlined_call_operand.vmem [shape: bf16[4,4], index: 1, kind: input, shape index: {}]
  %s2 = inlined_call_operand.vmem [shape: f32[1,4], index: 2, kind: input, shape index: {}]
  %s3 = inlined_call_operand.vmem [shape: f32[1,4], index: 3, kind: input, shape index: {}]
  %s4 = inlined_call_operand.vmem [shape: bf16[128,4], index: 4, kind: output, shape index: {}]
  %s5 = sld [smem:[#allocation0]]
  $region34: #{conv_block_forward.3} parent=0
    _
  %s7 = ssub.s32 1, %s5
  %s8 = scalar_select 0, %s7, %s5
  // Predicated region
  $region2: #{conv_block_forward.3} parent=0 // pred_check
    _
  $region3: #{conv_block_forward.3} parent=0 // pred_check_branch
    %10 = sbr.rel (0) target = $region5
  $region4: #{conv_block_forward.3} parent=0 // pred_region
    _
  $region5: #{conv_block_forward.3} parent=0 // pred_fallthru
    _
  // Predicated region
  $region6: #{conv_block_forward.3} parent=0 // pred_check
    _
  $region7: #{conv_block_forward.3} parent=0 // pred_check_branch
    %12 = sbr.rel (0) target = $region9
  $region8: #{conv_block_forward.3} parent=0 // pred_region
    _
  $region9: #{conv_block_forward.3} parent=0 // pred_fallthru
    _
  // Predicated region
  $region10: #{conv_block_forward.3} parent=0 // pred_check
    _
  $region11: #{conv_block_forward.3} parent=0 // pred_check_branch
    %14 = sbr.rel (0) target = $region13
  $region12: #{conv_block_forward.3} parent=0 // pred_region
    _
  $region13: #{conv_block_forward.3} parent=0 // pred_fallthru
    _
  // Predicated region
  $region14: #{conv_block_forward.3} parent=0 // pred_check
    _
  $region15: #{conv_block_forward.3} parent=0 // pred_check_branch
    %16 = sbr.rel (0) target = $region17
  $region16: #{conv_block_forward.3} parent=0 // pred_region
    _
  $region17: #{conv_block_forward.3} parent=0 // pred_fallthru
    _
  %p18 = scmp.eq.s32.totalorder 0, 0
  // Predicated region
  $region18: #{conv_block_forward.3} parent=0 // pred_check
    %p19 = pneg %p18
  $region19: #{conv_block_forward.3} parent=0 // pred_check_branch
    %21 = sbr.rel (%p19) target = $region21
  $region20: #{conv_block_forward.3} parent=0 // pred_region
    %vm22 = vcmask 31744
    %23 = vst.msk [vmem:[#allocation2] sm:$0xff] %vm22, 0.0
    %24 = vst.msk [vmem:[#allocation2 + $0x8] sm:$0xff] %vm22, 0.0
    %25 = vst.msk [vmem:[#allocation2 + $0x10] sm:$0xff] %vm22, 0.0
    %26 = vst.msk [vmem:[#allocation2 + $0x18] sm:$0xff] %vm22, 0.0
    %27 = vst.msk [vmem:[#allocation2 + $0x20] sm:$0xff] %vm22, 0.0
    %28 = vst.msk [vmem:[#allocation2 + $0x28] sm:$0xff] %vm22, 0.0
    %29 = vst.msk [vmem:[#allocation2 + $0x30] sm:$0xff] %vm22, 0.0
    %30 = vst.msk [vmem:[#allocation2 + $0x38] sm:$0xff] %vm22, 0.0
    %31 = vst.msk [vmem:[#allocation2 + $0x40] sm:$0xff] %vm22, 0.0
    %32 = vst.msk [vmem:[#allocation2 + $0x48] sm:$0xff] %vm22, 0.0
    %33 = vst.msk [vmem:[#allocation2 + $0x50] sm:$0xff] %vm22, 0.0
    %34 = vst.msk [vmem:[#allocation2 + $0x58] sm:$0xff] %vm22, 0.0
    %35 = vst.msk [vmem:[#allocation2 + $0x60] sm:$0xff] %vm22, 0.0
    %36 = vst.msk [vmem:[#allocation2 + $0x68] sm:$0xff] %vm22, 0.0
    %37 = vst.msk [vmem:[#allocation2 + $0x70] sm:$0xff] %vm22, 0.0
    %38 = vst.msk [vmem:[#allocation2 + $0x78] sm:$0xff] %vm22, 0.0
  $region21: #{conv_block_forward.3} parent=0 // pred_fallthru
    _
  %v39 = vld [vmem:[#allocation2] sm:$0xff]
  %v40 = vld [vmem:[#allocation2 + $0x8] sm:$0xff]
  %v41 = vld [vmem:[#allocation2 + $0x10] sm:$0xff]
  %v42 = vld [vmem:[#allocation2 + $0x18] sm:$0xff]
  %v43 = vld [vmem:[#allocation2 + $0x20] sm:$0xff]
  %v44 = vld [vmem:[#allocation2 + $0x28] sm:$0xff]
  %v45 = vld [vmem:[#allocation2 + $0x30] sm:$0xff]
  %v46 = vld [vmem:[#allocation2 + $0x38] sm:$0xff]
  %v47 = vld [vmem:[#allocation2 + $0x40] sm:$0xff]
  %v48 = vld [vmem:[#allocation2 + $0x48] sm:$0xff]
  %v49 = vld [vmem:[#allocation2 + $0x50] sm:$0xff]
  %v50 = vld [vmem:[#allocation2 + $0x58] sm:$0xff]
  %v51 = vld [vmem:[#allocation2 + $0x60] sm:$0xff]
  %v52 = vld [vmem:[#allocation2 + $0x68] sm:$0xff]
  %v53 = vld [vmem:[#allocation2 + $0x70] sm:$0xff]
  %v54 = vld [vmem:[#allocation2 + $0x78] sm:$0xff]
  %v55 = vld [vmem:[%s0] sm:$0xf]
  %v56 = vld [vmem:[%s0 + $0x4] sm:$0xf]
  %v57 = vld [vmem:[%s0 + $0x8] sm:$0xf]
  %v58 = vld [vmem:[%s0 + $0xc] sm:$0xf]
  %v59 = vld [vmem:[%s0 + $0x10] sm:$0xf]
  %v60 = vld [vmem:[%s0 + $0x14] sm:$0xf]
  %v61 = vld [vmem:[%s0 + $0x18] sm:$0xf]
  %v62 = vld [vmem:[%s0 + $0x1c] sm:$0xf]
  %v63 = vld [vmem:[%s0 + $0x20] sm:$0xf]
  %v64 = vld [vmem:[%s0 + $0x24] sm:$0xf]
  %v65 = vld [vmem:[%s0 + $0x28] sm:$0xf]
  %v66 = vld [vmem:[%s0 + $0x2c] sm:$0xf]
  %v67 = vld [vmem:[%s0 + $0x30] sm:$0xf]
  %v68 = vld [vmem:[%s0 + $0x34] sm:$0xf]
  %v69 = vld [vmem:[%s0 + $0x38] sm:$0xf]
  %v70 = vld [vmem:[%s0 + $0x3c] sm:$0xf]
  %v71 = vld [vmem:[%s1] sm:$0x3]
  %v88 = vunpack.c.l.b16 %v55
  %v89 = vunpack.c.l.b16 %v56
  %v90 = vunpack.c.l.b16 %v57
  %v91 = vunpack.c.l.b16 %v58
  %v92 = vunpack.c.l.b16 %v59
  %v93 = vunpack.c.l.b16 %v60
  %v94 = vunpack.c.l.b16 %v61
  %v95 = vunpack.c.l.b16 %v62
  %v96 = vunpack.c.l.b16 %v63
  %v97 = vunpack.c.l.b16 %v64
  %v98 = vunpack.c.l.b16 %v65
  %v99 = vunpack.c.l.b16 %v66
  %v100 = vunpack.c.l.b16 %v67
  %v101 = vunpack.c.l.b16 %v68
  %v102 = vunpack.c.l.b16 %v69
  %v103 = vunpack.c.l.b16 %v70
  %v104 = vpack.c.b16 %v89, %v88
  %v105 = vpack.c.b16 %v91, %v90
  %v106 = vpack.c.b16 %v93, %v92
  %v107 = vpack.c.b16 %v95, %v94
  %v108 = vpack.c.b16 %v97, %v96
  %v109 = vpack.c.b16 %v99, %v98
  %v110 = vpack.c.b16 %v101, %v100
  %v111 = vpack.c.b16 %v103, %v102
  %vm112 = vcmask 31744
  %v114 = vsel %vm112, %v104, 0
  %v117 = vsel %vm112, %v105, 0
  %v120 = vsel %vm112, %v106, 0
  %v123 = vsel %vm112, %v107, 0
  %v126 = vsel %vm112, %v108, 0
  %v129 = vsel %vm112, %v109, 0
  %v132 = vsel %vm112, %v110, 0
  %v135 = vsel %vm112, %v111, 0
  %vm137 = vcmask 1041408
  %v139 = vsel %vm137, %v71, 0
  %141 = vmatprep.subr.bf16.mxu0 0
  %142 = vmatpush1.bf16.msra.mxu0 %v139
  %143 = vmatprep.subr.bf16.mxu0 0
  %144 = vmatpush1.bf16.msra.mxu0 0
  %145 = vmatprep.subr.bf16.mxu0 0
  %146 = vmatpush1.bf16.msra.mxu0 0
  %147 = vmatprep.subr.bf16.mxu0 0
  %148 = vmatpush1.bf16.msra.mxu0 0
  %149 = vmatprep.subr.bf16.mxu0 0
  %150 = vmatpush1.bf16.msra.mxu0 0
  %151 = vmatprep.subr.bf16.mxu0 0
  %152 = vmatpush1.bf16.msra.mxu0 0
  %153 = vmatprep.subr.bf16.mxu0 0
  %154 = vmatpush1.bf16.msra.mxu0 0
  %155 = vmatprep.subr.bf16.mxu0 0
  %156 = vmatpush1.bf16.msra.mxu0 0
  %157 = vmatprep.subr.bf16.mxu0 0
  %158 = vmatpush1.bf16.msra.mxu0 0
  %159 = vmatprep.subr.bf16.mxu0 0
  %160 = vmatpush1.bf16.msra.mxu0 0
  %161 = vmatprep.subr.bf16.mxu0 0
  %162 = vmatpush1.bf16.msra.mxu0 0
  %163 = vmatprep.subr.bf16.mxu0 0
  %164 = vmatpush1.bf16.msra.mxu0 0
  %165 = vmatprep.subr.bf16.mxu0 0
  %166 = vmatpush1.bf16.msra.mxu0 0
  %167 = vmatprep.subr.bf16.mxu0 0
  %168 = vmatpush1.bf16.msra.mxu0 0
  %169 = vmatprep.subr.bf16.mxu0 0
  %170 = vmatpush1.bf16.msra.mxu0 0
  %171 = vmatprep.subr.bf16.mxu0 0
  %172 = vmatpush1.bf16.msra.mxu0 0
  %173 = vmatprep.mubr.bf16.mxu0 0
  %174 = vmatmul.mubr.bf16.gmra.mrb[0].mxu0 %v114
  %v175 = vpop.f32.mrb[0].mxu0
  %v176 = vadd.f32 0.0, %v175
  %v177 = vpop.f32.mrb[0].mxu0
  %v178 = vpop.f32.mrb[0].mxu0
  %v179 = vadd.f32 0.0, %v178
  %v180 = vpop.f32.mrb[0].mxu0
  %181 = vmatprep.mubr.bf16.mxu0 0
  %182 = vmatmul.mubr.bf16.gmra.mrb[0].mxu0 %v117
  %v183 = vpop.f32.mrb[0].mxu0
  %v184 = vadd.f32 0.0, %v183
  %v185 = vpop.f32.mrb[0].mxu0
  %v186 = vpop.f32.mrb[0].mxu0
  %v187 = vadd.f32 0.0, %v186
  %v188 = vpop.f32.mrb[0].mxu0
  %189 = vmatprep.mubr.bf16.mxu0 0
  %190 = vmatmul.mubr.bf16.gmra.mrb[0].mxu0 %v120
  %v191 = vpop.f32.mrb[0].mxu0
  %v192 = vadd.f32 0.0, %v191
  %v193 = vpop.f32.mrb[0].mxu0
  %v194 = vpop.f32.mrb[0].mxu0
  %v195 = vadd.f32 0.0, %v194
  %v196 = vpop.f32.mrb[0].mxu0
  %197 = vmatprep.mubr.bf16.mxu0 0
  %198 = vmatmul.mubr.bf16.gmra.mrb[0].mxu0 %v123
  %v199 = vpop.f32.mrb[0].mxu0
  %v200 = vadd.f32 0.0, %v199
  %v201 = vpop.f32.mrb[0].mxu0
  %v202 = vpop.f32.mrb[0].mxu0
  %v203 = vadd.f32 0.0, %v202
  %v204 = vpop.f32.mrb[0].mxu0
  %205 = vmatprep.mubr.bf16.mxu0 0
  %206 = vmatmul.mubr.bf16.gmra.mrb[0].mxu0 %v126
  %v207 = vpop.f32.mrb[0].mxu0
  %v208 = vadd.f32 0.0, %v207
  %v209 = vpop.f32.mrb[0].mxu0
  %v210 = vpop.f32.mrb[0].mxu0
  %v211 = vadd.f32 0.0, %v210
  %v212 = vpop.f32.mrb[0].mxu0
  %213 = vmatprep.mubr.bf16.mxu0 0
  %214 = vmatmul.mubr.bf16.gmra.mrb[0].mxu0 %v129
  %v215 = vpop.f32.mrb[0].mxu0
  %v216 = vadd.f32 0.0, %v215
  %v217 = vpop.f32.mrb[0].mxu0
  %v218 = vpop.f32.mrb[0].mxu0
  %v219 = vadd.f32 0.0, %v218
  %v220 = vpop.f32.mrb[0].mxu0
  %221 = vmatprep.mubr.bf16.mxu0 0
  %222 = vmatmul.mubr.bf16.gmra.mrb[0].mxu0 %v132
  %v223 = vpop.f32.mrb[0].mxu0
  %v224 = vadd.f32 0.0, %v223
  %v225 = vpop.f32.mrb[0].mxu0
  %v226 = vpop.f32.mrb[0].mxu0
  %v227 = vadd.f32 0.0, %v226
  %v228 = vpop.f32.mrb[0].mxu0
  %229 = vmatprep.mubr.bf16.mxu0 0
  %230 = vmatmul.mubr.bf16.gmra.mrb[0].mxu0 %v135
  %v231 = vpop.f32.mrb[0].mxu0
  %v232 = vadd.f32 0.0, %v231
  %v233 = vpop.f32.mrb[0].mxu0
  %v234 = vpop.f32.mrb[0].mxu0
  %v235 = vadd.f32 0.0, %v234
  %v236 = vpop.f32.mrb[0].mxu0
  %237 = vdwg.mxu0
  %v238 = vadd.f32 %v39, %v176
  %v239 = vadd.f32 %v40, %v179
  %v240 = vadd.f32 %v41, %v184
  %v241 = vadd.f32 %v42, %v187
  %v242 = vadd.f32 %v43, %v192
  %v243 = vadd.f32 %v44, %v195
  %v244 = vadd.f32 %v45, %v200
  %v245 = vadd.f32 %v46, %v203
  %v246 = vadd.f32 %v47, %v208
  %v247 = vadd.f32 %v48, %v211
  %v248 = vadd.f32 %v49, %v216
  %v249 = vadd.f32 %v50, %v219
  %v250 = vadd.f32 %v51, %v224
  %v251 = vadd.f32 %v52, %v227
  %v252 = vadd.f32 %v53, %v232
  %v253 = vadd.f32 %v54, %v235
  %254 = vst.msk [vmem:[#allocation2] sm:$0xff] %vm112, %v238
  %255 = vst.msk [vmem:[#allocation2 + $0x8] sm:$0xff] %vm112, %v239
  %256 = vst.msk [vmem:[#allocation2 + $0x10] sm:$0xff] %vm112, %v240
  %257 = vst.msk [vmem:[#allocation2 + $0x18] sm:$0xff] %vm112, %v241
  %258 = vst.msk [vmem:[#allocation2 + $0x20] sm:$0xff] %vm112, %v242
  %259 = vst.msk [vmem:[#allocation2 + $0x28] sm:$0xff] %vm112, %v243
  %260 = vst.msk [vmem:[#allocation2 + $0x30] sm:$0xff] %vm112, %v244
  %261 = vst.msk [vmem:[#allocation2 + $0x38] sm:$0xff] %vm112, %v245
  %262 = vst.msk [vmem:[#allocation2 + $0x40] sm:$0xff] %vm112, %v246
  %263 = vst.msk [vmem:[#allocation2 + $0x48] sm:$0xff] %vm112, %v247
  %264 = vst.msk [vmem:[#allocation2 + $0x50] sm:$0xff] %vm112, %v248
  %265 = vst.msk [vmem:[#allocation2 + $0x58] sm:$0xff] %vm112, %v249
  %266 = vst.msk [vmem:[#allocation2 + $0x60] sm:$0xff] %vm112, %v250
  %267 = vst.msk [vmem:[#allocation2 + $0x68] sm:$0xff] %vm112, %v251
  %268 = vst.msk [vmem:[#allocation2 + $0x70] sm:$0xff] %vm112, %v252
  %269 = vst.msk [vmem:[#allocation2 + $0x78] sm:$0xff] %vm112, %v253
  // Predicated region
  $region22: #{conv_block_forward.3} parent=0 // pred_check
    %p270 = pneg %p18
  $region23: #{conv_block_forward.3} parent=0 // pred_check_branch
    %272 = sbr.rel (%p270) target = $region25
  $region24: #{conv_block_forward.3} parent=0 // pred_region
    %v273 = vld [vmem:[#allocation2] sm:$0xff]
    %v274 = vld [vmem:[#allocation2 + $0x8] sm:$0xff]
    %v275 = vld [vmem:[#allocation2 + $0x10] sm:$0xff]
    %v276 = vld [vmem:[#allocation2 + $0x18] sm:$0xff]
    %v277 = vld [vmem:[#allocation2 + $0x20] sm:$0xff]
    %v278 = vld [vmem:[#allocation2 + $0x28] sm:$0xff]
    %v279 = vld [vmem:[#allocation2 + $0x30] sm:$0xff]
    %v280 = vld [vmem:[#allocation2 + $0x38] sm:$0xff]
    %v281 = vld [vmem:[#allocation2 + $0x40] sm:$0xff]
    %v282 = vld [vmem:[#allocation2 + $0x48] sm:$0xff]
    %v283 = vld [vmem:[#allocation2 + $0x50] sm:$0xff]
    %v284 = vld [vmem:[#allocation2 + $0x58] sm:$0xff]
    %v285 = vld [vmem:[#allocation2 + $0x60] sm:$0xff]
    %v286 = vld [vmem:[#allocation2 + $0x68] sm:$0xff]
    %v287 = vld [vmem:[#allocation2 + $0x70] sm:$0xff]
    %v288 = vld [vmem:[#allocation2 + $0x78] sm:$0xff]
    %v289 = vld [vmem:[%s2] sm:$0x1]
    %v291 = vlaneseq
    %v292 = vshrl.u32 %v291, 7
    %v293 = vsub.s32 0, %v292
    %v294 = vrot.slane %v289, %v293
    %v296 = vmul.f32 %v273, %v294
    %v297 = vmul.f32 %v274, %v294
    %v298 = vmul.f32 %v275, %v294
    %v299 = vmul.f32 %v276, %v294
    %v300 = vmul.f32 %v277, %v294
    %v301 = vmul.f32 %v278, %v294
    %v302 = vmul.f32 %v279, %v294
    %v303 = vmul.f32 %v280, %v294
    %v304 = vmul.f32 %v281, %v294
    %v305 = vmul.f32 %v282, %v294
    %v306 = vmul.f32 %v283, %v294
    %v307 = vmul.f32 %v284, %v294
    %v308 = vmul.f32 %v285, %v294
    %v309 = vmul.f32 %v286, %v294
    %v310 = vmul.f32 %v287, %v294
    %v311 = vmul.f32 %v288, %v294
    %v312 = vld [vmem:[%s3] sm:$0x1]
    %v314 = vlaneseq
    %v315 = vshrl.u32 %v314, 7
    %v316 = vsub.s32 0, %v315
    %v317 = vrot.slane %v312, %v316
    %v319 = vadd.f32 %v296, %v317
    %v320 = vadd.f32 %v297, %v317
    %v321 = vadd.f32 %v298, %v317
    %v322 = vadd.f32 %v299, %v317
    %v323 = vadd.f32 %v300, %v317
    %v324 = vadd.f32 %v301, %v317
    %v325 = vadd.f32 %v302, %v317
    %v326 = vadd.f32 %v303, %v317
    %v327 = vadd.f32 %v304, %v317
    %v328 = vadd.f32 %v305, %v317
    %v329 = vadd.f32 %v306, %v317
    %v330 = vadd.f32 %v307, %v317
    %v331 = vadd.f32 %v308, %v317
    %v332 = vadd.f32 %v309, %v317
    %v333 = vadd.f32 %v310, %v317
    %v334 = vadd.f32 %v311, %v317
    %v335 = vmax.f32 %v319, 0.0
    %v336 = vmax.f32 %v320, 0.0
    %v337 = vmax.f32 %v321, 0.0
    %v338 = vmax.f32 %v322, 0.0
    %v339 = vmax.f32 %v323, 0.0
    %v340 = vmax.f32 %v324, 0.0
    %v341 = vmax.f32 %v325, 0.0
    %v342 = vmax.f32 %v326, 0.0
    %v343 = vmax.f32 %v327, 0.0
    %v344 = vmax.f32 %v328, 0.0
    %v345 = vmax.f32 %v329, 0.0
    %v346 = vmax.f32 %v330, 0.0
    %v347 = vmax.f32 %v331, 0.0
    %v348 = vmax.f32 %v332, 0.0
    %v349 = vmax.f32 %v333, 0.0
    %v350 = vmax.f32 %v334, 0.0
    %v351 = vpack.c.bf16 %v336, %v335
    %v352 = vpack.c.bf16 %v338, %v337
    %v353 = vpack.c.bf16 %v340, %v339
    %v354 = vpack.c.bf16 %v342, %v341
    %v355 = vpack.c.bf16 %v344, %v343
    %v356 = vpack.c.bf16 %v346, %v345
    %v357 = vpack.c.bf16 %v348, %v347
    %v358 = vpack.c.bf16 %v350, %v349
    %v367 = vunpack.c.l.b16 %v351
    %v368 = vunpack.c.h.b16 %v351
    %v369 = vunpack.c.l.b16 %v352
    %v370 = vunpack.c.h.b16 %v352
    %v371 = vunpack.c.l.b16 %v353
    %v372 = vunpack.c.h.b16 %v353
    %v373 = vunpack.c.l.b16 %v354
    %v374 = vunpack.c.h.b16 %v354
    %v375 = vunpack.c.l.b16 %v355
    %v376 = vunpack.c.h.b16 %v355
    %v377 = vunpack.c.l.b16 %v356
    %v378 = vunpack.c.h.b16 %v356
    %v379 = vunpack.c.l.b16 %v357
    %v380 = vunpack.c.h.b16 %v357
    %v381 = vunpack.c.l.b16 %v358
    %v382 = vunpack.c.h.b16 %v358
    %v383 = vpack.c.b16 %v367, %v367
    %v384 = vpack.c.b16 %v368, %v368
    %v385 = vpack.c.b16 %v369, %v369
    %v386 = vpack.c.b16 %v370, %v370
    %v387 = vpack.c.b16 %v371, %v371
    %v388 = vpack.c.b16 %v372, %v372
    %v389 = vpack.c.b16 %v373, %v373
    %v390 = vpack.c.b16 %v374, %v374
    %v391 = vpack.c.b16 %v375, %v375
    %v392 = vpack.c.b16 %v376, %v376
    %v393 = vpack.c.b16 %v377, %v377
    %v394 = vpack.c.b16 %v378, %v378
    %v395 = vpack.c.b16 %v379, %v379
    %v396 = vpack.c.b16 %v380, %v380
    %v397 = vpack.c.b16 %v381, %v381
    %v398 = vpack.c.b16 %v382, %v382
    %vm415 = vcmask 27648
    %416 = vst.msk [vmem:[%s4] sm:$0xf] %vm415, %v383
    %417 = vst.msk [vmem:[%s4 + $0x4] sm:$0xf] %vm415, %v384
    %418 = vst.msk [vmem:[%s4 + $0x8] sm:$0xf] %vm415, %v385
    %419 = vst.msk [vmem:[%s4 + $0xc] sm:$0xf] %vm415, %v386
    %420 = vst.msk [vmem:[%s4 + $0x10] sm:$0xf] %vm415, %v387
    %421 = vst.msk [vmem:[%s4 + $0x14] sm:$0xf] %vm415, %v388
    %422 = vst.msk [vmem:[%s4 + $0x18] sm:$0xf] %vm415, %v389
    %423 = vst.msk [vmem:[%s4 + $0x1c] sm:$0xf] %vm415, %v390
    %424 = vst.msk [vmem:[%s4 + $0x20] sm:$0xf] %vm415, %v391
    %425 = vst.msk [vmem:[%s4 + $0x24] sm:$0xf] %vm415, %v392
    %426 = vst.msk [vmem:[%s4 + $0x28] sm:$0xf] %vm415, %v393
    %427 = vst.msk [vmem:[%s4 + $0x2c] sm:$0xf] %vm415, %v394
    %428 = vst.msk [vmem:[%s4 + $0x30] sm:$0xf] %vm415, %v395
    %429 = vst.msk [vmem:[%s4 + $0x34] sm:$0xf] %vm415, %v396
    %430 = vst.msk [vmem:[%s4 + $0x38] sm:$0xf] %vm415, %v397
    %431 = vst.msk [vmem:[%s4 + $0x3c] sm:$0xf] %vm415, %v398
  $region25: #{conv_block_forward.3} parent=0 // pred_fallthru
    _
  // Predicated region
  $region26: #{conv_block_forward.3} parent=0 // pred_check
    _
  $region27: #{conv_block_forward.3} parent=0 // pred_check_branch
    %433 = sbr.rel (0) target = $region29
  $region28: #{conv_block_forward.3} parent=0 // pred_region
    _
  $region29: #{conv_block_forward.3} parent=0 // pred_fallthru
    _
  // Predicated region
  $region30: #{conv_block_forward.3} parent=0 // pred_check
    _
  $region31: #{conv_block_forward.3} parent=0 // pred_check_branch
    %435 = sbr.rel (0) target = $region33
  $region32: #{conv_block_forward.3} parent=0 // pred_region
    _
  $region33: #{conv_block_forward.3} parent=0 // pred_fallthru
    _

// kernel: conv_block_forward.5
$region0: #{conv_block_forward.5}
  #allocation0 [shape = 'u32[]', space=smem, size = 0x4, offset = 0x4, fixed_abs, tag = 'smem constant byte address 0x4 - core index']
  #allocation1 [shape = 'u32[144,128]{1,0:T(1,128)}', space=vmem, size = 0x12000, scoped, tag = 'internal scratch']
  %s0 = inlined_call_operand.vmem [shape: bf16[128,8], index: 0, kind: input, shape index: {}]
  %s1 = inlined_call_operand.vmem [shape: bf16[128,4], index: 1, kind: input, shape index: {}]
  %s2 = inlined_call_operand.vmem [shape: bf16[8,16], index: 2, kind: input, shape index: {}]
  %s3 = inlined_call_operand.vmem [shape: bf16[4,16], index: 3, kind: input, shape index: {}]
  %s4 = inlined_call_operand.vmem [shape: f32[1,16], index: 4, kind: input, shape index: {}]
  %s5 = inlined_call_operand.vmem [shape: f32[1,16], index: 5, kind: input, shape index: {}]
  %s6 = inlined_call_operand.vmem [shape: f32[1,16], index: 6, kind: input, shape index: {}]
  %s7 = inlined_call_operand.vmem [shape: f32[1,16], index: 7, kind: input, shape index: {}]
  %s8 = inlined_call_operand.hbm [shape: f32[128,16], index: 8, kind: output, shape index: {}]
  %s9 = sld [smem:[#allocation0]]
  $region42: #{conv_block_forward.5} parent=0
    _
  %s11 = ssub.s32 1, %s9
  %s12 = scalar_select 0, %s11, %s9
  $region1: #{conv_block_forward.5} parent=0
    #allocation2 [shape = 'u8[65536]{0}', space=vmem, size = 0x10000, scoped, tag = 'output window, operand 0, single buffered']
    #allocation3 [shape = 's32[1]{0}', space=sflag, size = 0x4, scoped, tag = 'scoped memory for conv_block_forward.5']
    %13 = vsyncpa [#allocation3], 0
    // Predicated region
    $region2: #{conv_block_forward.5} parent=1 // pred_check
      _
    $region3: #{conv_block_forward.5} parent=1 // pred_check_branch
      %15 = sbr.rel (0) target = $region5
    $region4: #{conv_block_forward.5} parent=1 // pred_region
      _
    $region5: #{conv_block_forward.5} parent=1 // pred_fallthru
      _
    // Predicated region
    $region6: #{conv_block_forward.5} parent=1 // pred_check
      _
    $region7: #{conv_block_forward.5} parent=1 // pred_check_branch
      %17 = sbr.rel (0) target = $region9
    $region8: #{conv_block_forward.5} parent=1 // pred_region
      _
    $region9: #{conv_block_forward.5} parent=1 // pred_fallthru
      _
    // Predicated region
    $region10: #{conv_block_forward.5} parent=1 // pred_check
      _
    $region11: #{conv_block_forward.5} parent=1 // pred_check_branch
      %19 = sbr.rel (0) target = $region13
    $region12: #{conv_block_forward.5} parent=1 // pred_region
      _
    $region13: #{conv_block_forward.5} parent=1 // pred_fallthru
      _
    // Predicated region
    $region14: #{conv_block_forward.5} parent=1 // pred_check
      _
    $region15: #{conv_block_forward.5} parent=1 // pred_check_branch
      %21 = sbr.rel (0) target = $region17
    $region16: #{conv_block_forward.5} parent=1 // pred_region
      _
    $region17: #{conv_block_forward.5} parent=1 // pred_fallthru
      _
    // Predicated region
    $region18: #{conv_block_forward.5} parent=1 // pred_check
      _
    $region19: #{conv_block_forward.5} parent=1 // pred_check_branch
      %23 = sbr.rel (0) target = $region21
    $region20: #{conv_block_forward.5} parent=1 // pred_region
      _
    $region21: #{conv_block_forward.5} parent=1 // pred_fallthru
      _
    // Predicated region
    $region22: #{conv_block_forward.5} parent=1 // pred_check
      _
    $region23: #{conv_block_forward.5} parent=1 // pred_check_branch
      %25 = sbr.rel (0) target = $region25
    $region24: #{conv_block_forward.5} parent=1 // pred_region
      _
    $region25: #{conv_block_forward.5} parent=1 // pred_fallthru
      _
    // Predicated region
    $region26: #{conv_block_forward.5} parent=1 // pred_check
      _
    $region27: #{conv_block_forward.5} parent=1 // pred_check_branch
      %27 = sbr.rel (0) target = $region29
    $region28: #{conv_block_forward.5} parent=1 // pred_region
      _
    $region29: #{conv_block_forward.5} parent=1 // pred_fallthru
      _
    // Predicated region
    $region30: #{conv_block_forward.5} parent=1 // pred_check
      _
    $region31: #{conv_block_forward.5} parent=1 // pred_check_branch
      %29 = sbr.rel (0) target = $region33
    $region32: #{conv_block_forward.5} parent=1 // pred_region
      _
    $region33: #{conv_block_forward.5} parent=1 // pred_fallthru
      _
    %v31 = vld [vmem:[%s0] sm:$0xf]
    %v32 = vld [vmem:[%s0 + $0x4] sm:$0xf]
    %v33 = vld [vmem:[%s0 + $0x8] sm:$0xf]
    %v34 = vld [vmem:[%s0 + $0xc] sm:$0xf]
    %v35 = vld [vmem:[%s0 + $0x10] sm:$0xf]
    %v36 = vld [vmem:[%s0 + $0x14] sm:$0xf]
    %v37 = vld [vmem:[%s0 + $0x18] sm:$0xf]
    %v38 = vld [vmem:[%s0 + $0x1c] sm:$0xf]
    %v39 = vld [vmem:[%s0 + $0x20] sm:$0xf]
    %v40 = vld [vmem:[%s0 + $0x24] sm:$0xf]
    %v41 = vld [vmem:[%s0 + $0x28] sm:$0xf]
    %v42 = vld [vmem:[%s0 + $0x2c] sm:$0xf]
    %v43 = vld [vmem:[%s0 + $0x30] sm:$0xf]
    %v44 = vld [vmem:[%s0 + $0x34] sm:$0xf]
    %v45 = vld [vmem:[%s0 + $0x38] sm:$0xf]
    %v46 = vld [vmem:[%s0 + $0x3c] sm:$0xf]
    %v47 = vld [vmem:[%s2] sm:$0xf]
    %v64 = vunpack.c.l.b16 %v31
    %v65 = vunpack.c.l.b16 %v32
    %v66 = vunpack.c.l.b16 %v33
    %v67 = vunpack.c.l.b16 %v34
    %v68 = vunpack.c.l.b16 %v35
    %v69 = vunpack.c.l.b16 %v36
    %v70 = vunpack.c.l.b16 %v37
    %v71 = vunpack.c.l.b16 %v38
    %v72 = vunpack.c.l.b16 %v39
    %v73 = vunpack.c.l.b16 %v40
    %v74 = vunpack.c.l.b16 %v41
    %v75 = vunpack.c.l.b16 %v42
    %v76 = vunpack.c.l.b16 %v43
    %v77 = vunpack.c.l.b16 %v44
    %v78 = vunpack.c.l.b16 %v45
    %v79 = vunpack.c.l.b16 %v46
    %v80 = vpack.c.b16 %v65, %v64
    %v81 = vpack.c.b16 %v67, %v66
    %v82 = vpack.c.b16 %v69, %v68
    %v83 = vpack.c.b16 %v71, %v70
    %v84 = vpack.c.b16 %v73, %v72
    %v85 = vpack.c.b16 %v75, %v74
    %v86 = vpack.c.b16 %v77, %v76
    %v87 = vpack.c.b16 %v79, %v78
    %vm88 = vcmask 64512
    %v90 = vsel %vm88, %v80, 0
    %v93 = vsel %vm88, %v81, 0
    %v96 = vsel %vm88, %v82, 0
    %v99 = vsel %vm88, %v83, 0
    %v102 = vsel %vm88, %v84, 0
    %v105 = vsel %vm88, %v85, 0
    %v108 = vsel %vm88, %v86, 0
    %v111 = vsel %vm88, %v87, 0
    %vm113 = vcmask 1043456
    %v115 = vsel %vm113, %v47, 0
    %117 = vmatprep.subr.bf16.mxu0 0
    %118 = vmatpush1.bf16.msra.mxu0 %v115
    %119 = vmatprep.subr.bf16.mxu0 0
    %120 = vmatpush1.bf16.msra.mxu0 0
    %121 = vmatprep.subr.bf16.mxu0 0
    %122 = vmatpush1.bf16.msra.mxu0 0
    %123 = vmatprep.subr.bf16.mxu0 0
    %124 = vmatpush1.bf16.msra.mxu0 0
    %125 = vmatprep.subr.bf16.mxu0 0
    %126 = vmatpush1.bf16.msra.mxu0 0
    %127 = vmatprep.subr.bf16.mxu0 0
    %128 = vmatpush1.bf16.msra.mxu0 0
    %129 = vmatprep.subr.bf16.mxu0 0
    %130 = vmatpush1.bf16.msra.mxu0 0
    %131 = vmatprep.subr.bf16.mxu0 0
    %132 = vmatpush1.bf16.msra.mxu0 0
    %133 = vmatprep.subr.bf16.mxu0 0
    %134 = vmatpush1.bf16.msra.mxu0 0
    %135 = vmatprep.subr.bf16.mxu0 0
    %136 = vmatpush1.bf16.msra.mxu0 0
    %137 = vmatprep.subr.bf16.mxu0 0
    %138 = vmatpush1.bf16.msra.mxu0 0
    %139 = vmatprep.subr.bf16.mxu0 0
    %140 = vmatpush1.bf16.msra.mxu0 0
    %141 = vmatprep.subr.bf16.mxu0 0
    %142 = vmatpush1.bf16.msra.mxu0 0
    %143 = vmatprep.subr.bf16.mxu0 0
    %144 = vmatpush1.bf16.msra.mxu0 0
    %145 = vmatprep.subr.bf16.mxu0 0
    %146 = vmatpush1.bf16.msra.mxu0 0
    %147 = vmatprep.subr.bf16.mxu0 0
    %148 = vmatpush1.bf16.msra.mxu0 0
    %149 = vmatprep.mubr.bf16.mxu0 0
    %150 = vmatmul.mubr.bf16.gmra.mrb[0].mxu0 %v90
    %v151 = vpop.f32.mrb[0].mxu0
    %v152 = vadd.f32 0.0, %v151
    %v153 = vpop.f32.mrb[0].mxu0
    %v154 = vpop.f32.mrb[0].mxu0
    %v155 = vadd.f32 0.0, %v154
    %v156 = vpop.f32.mrb[0].mxu0
    %157 = vmatprep.mubr.bf16.mxu0 0
    %158 = vmatmul.mubr.bf16.gmra.mrb[0].mxu0 %v93
    %v159 = vpop.f32.mrb[0].mxu0
    %v160 = vadd.f32 0.0, %v159
    %v161 = vpop.f32.mrb[0].mxu0
    %v162 = vpop.f32.mrb[0].mxu0
    %v163 = vadd.f32 0.0, %v162
    %v164 = vpop.f32.mrb[0].mxu0
    %165 = vmatprep.mubr.bf16.mxu0 0
    %166 = vmatmul.mubr.bf16.gmra.mrb[0].mxu0 %v96
    %v167 = vpop.f32.mrb[0].mxu0
    %v168 = vadd.f32 0.0, %v167
    %v169 = vpop.f32.mrb[0].mxu0
    %v170 = vpop.f32.mrb[0].mxu0
    %v171 = vadd.f32 0.0, %v170
    %v172 = vpop.f32.mrb[0].mxu0
    %173 = vmatprep.mubr.bf16.mxu0 0
    %174 = vmatmul.mubr.bf16.gmra.mrb[0].mxu0 %v99
    %v175 = vpop.f32.mrb[0].mxu0
    %v176 = vadd.f32 0.0, %v175
    %v177 = vpop.f32.mrb[0].mxu0
    %v178 = vpop.f32.mrb[0].mxu0
    %v179 = vadd.f32 0.0, %v178
    %v180 = vpop.f32.mrb[0].mxu0
    %181 = vmatprep.mubr.bf16.mxu0 0
    %182 = vmatmul.mubr.bf16.gmra.mrb[0].mxu0 %v102
    %v183 = vpop.f32.mrb[0].mxu0
    %v184 = vadd.f32 0.0, %v183
    %v185 = vpop.f32.mrb[0].mxu0
    %v186 = vpop.f32.mrb[0].mxu0
    %v187 = vadd.f32 0.0, %v186
    %v188 = vpop.f32.mrb[0].mxu0
    %189 = vmatprep.mubr.bf16.mxu0 0
    %190 = vmatmul.mubr.bf16.gmra.mrb[0].mxu0 %v105
    %v191 = vpop.f32.mrb[0].mxu0
    %v192 = vadd.f32 0.0, %v191
    %v193 = vpop.f32.mrb[0].mxu0
    %v194 = vpop.f32.mrb[0].mxu0
    %v195 = vadd.f32 0.0, %v194
    %v196 = vpop.f32.mrb[0].mxu0
    %197 = vmatprep.mubr.bf16.mxu0 0
    %198 = vmatmul.mubr.bf16.gmra.mrb[0].mxu0 %v108
    %v199 = vpop.f32.mrb[0].mxu0
    %v200 = vadd.f32 0.0, %v199
    %v201 = vpop.f32.mrb[0].mxu0
    %v202 = vpop.f32.mrb[0].mxu0
    %v203 = vadd.f32 0.0, %v202
    %v204 = vpop.f32.mrb[0].mxu0
    %205 = vmatprep.mubr.bf16.mxu0 0
    %206 = vmatmul.mubr.bf16.gmra.mrb[0].mxu0 %v111
    %v207 = vpop.f32.mrb[0].mxu0
    %v208 = vadd.f32 0.0, %v207
    %v209 = vpop.f32.mrb[0].mxu0
    %v210 = vpop.f32.mrb[0].mxu0
    %v211 = vadd.f32 0.0, %v210
    %v212 = vpop.f32.mrb[0].mxu0
    %213 = vdwg.mxu0
    %v214 = vld [vmem:[%s4] sm:$0x1]
    %v216 = vlaneseq
    %v217 = vshrl.u32 %v216, 7
    %v218 = vsub.s32 0, %v217
    %v219 = vrot.slane %v214, %v218
    %v221 = vmul.f32 %v152, %v219
    %v222 = vmul.f32 %v155, %v219
    %v223 = vmul.f32 %v160, %v219
    %v224 = vmul.f32 %v163, %v219
    %v225 = vmul.f32 %v168, %v219
    %v226 = vmul.f32 %v171, %v219
    %v227 = vmul.f32 %v176, %v219
    %v228 = vmul.f32 %v179, %v219
    %v229 = vmul.f32 %v184, %v219
    %v230 = vmul.f32 %v187, %v219
    %v231 = vmul.f32 %v192, %v219
    %v232 = vmul.f32 %v195, %v219
    %v233 = vmul.f32 %v200, %v219
    %v234 = vmul.f32 %v203, %v219
    %v235 = vmul.f32 %v208, %v219
    %v236 = vmul.f32 %v211, %v219
    %v237 = vld [vmem:[%s5] sm:$0x1]
    %v239 = vlaneseq
    %v240 = vshrl.u32 %v239, 7
    %v241 = vsub.s32 0, %v240
    %v242 = vrot.slane %v237, %v241
    %v244 = vadd.f32 %v221, %v242
    %v245 = vadd.f32 %v222, %v242
    %v246 = vadd.f32 %v223, %v242
    %v247 = vadd.f32 %v224, %v242
    %v248 = vadd.f32 %v225, %v242
    %v249 = vadd.f32 %v226, %v242
    %v250 = vadd.f32 %v227, %v242
    %v251 = vadd.f32 %v228, %v242
    %v252 = vadd.f32 %v229, %v242
    %v253 = vadd.f32 %v230, %v242
    %v254 = vadd.f32 %v231, %v242
    %v255 = vadd.f32 %v232, %v242
    %v256 = vadd.f32 %v233, %v242
    %v257 = vadd.f32 %v234, %v242
    %v258 = vadd.f32 %v235, %v242
    %v259 = vadd.f32 %v236, %v242
    %v260 = vld [vmem:[%s1] sm:$0xf]
    %v261 = vld [vmem:[%s1 + $0x4] sm:$0xf]
    %v262 = vld [vmem:[%s1 + $0x8] sm:$0xf]
    %v263 = vld [vmem:[%s1 + $0xc] sm:$0xf]
    %v264 = vld [vmem:[%s1 + $0x10] sm:$0xf]
    %v265 = vld [vmem:[%s1 + $0x14] sm:$0xf]
    %v266 = vld [vmem:[%s1 + $0x18] sm:$0xf]
    %v267 = vld [vmem:[%s1 + $0x1c] sm:$0xf]
    %v268 = vld [vmem:[%s1 + $0x20] sm:$0xf]
    %v269 = vld [vmem:[%s1 + $0x24] sm:$0xf]
    %v270 = vld [vmem:[%s1 + $0x28] sm:$0xf]
    %v271 = vld [vmem:[%s1 + $0x2c] sm:$0xf]
    %v272 = vld [vmem:[%s1 + $0x30] sm:$0xf]
    %v273 = vld [vmem:[%s1 + $0x34] sm:$0xf]
    %v274 = vld [vmem:[%s1 + $0x38] sm:$0xf]
    %v275 = vld [vmem:[%s1 + $0x3c] sm:$0xf]
    %v276 = vld [vmem:[%s3] sm:$0x3]
    %v293 = vunpack.c.l.b16 %v260
    %v294 = vunpack.c.l.b16 %v261
    %v295 = vunpack.c.l.b16 %v262
    %v296 = vunpack.c.l.b16 %v263
    %v297 = vunpack.c.l.b16 %v264
    %v298 = vunpack.c.l.b16 %v265
    %v299 = vunpack.c.l.b16 %v266
    %v300 = vunpack.c.l.b16 %v267
    %v301 = vunpack.c.l.b16 %v268
    %v302 = vunpack.c.l.b16 %v269
    %v303 = vunpack.c.l.b16 %v270
    %v304 = vunpack.c.l.b16 %v271
    %v305 = vunpack.c.l.b16 %v272
    %v306 = vunpack.c.l.b16 %v273
    %v307 = vunpack.c.l.b16 %v274
    %v308 = vunpack.c.l.b16 %v275
    %v309 = vpack.c.b16 %v294, %v293
    %v310 = vpack.c.b16 %v296, %v295
    %v311 = vpack.c.b16 %v298, %v297
    %v312 = vpack.c.b16 %v300, %v299
    %v313 = vpack.c.b16 %v302, %v301
    %v314 = vpack.c.b16 %v304, %v303
    %v315 = vpack.c.b16 %v306, %v305
    %v316 = vpack.c.b16 %v308, %v307
    %vm317 = vcmask 31744
    %v319 = vsel %vm317, %v309, 0
    %v322 = vsel %vm317, %v310, 0
    %v325 = vsel %vm317, %v311, 0
    %v328 = vsel %vm317, %v312, 0
    %v331 = vsel %vm317, %v313, 0
    %v334 = vsel %vm317, %v314, 0
    %v337 = vsel %vm317, %v315, 0
    %v340 = vsel %vm317, %v316, 0
    %vm342 = vcmask 1041408
    %v344 = vsel %vm342, %v276, 0
    %346 = vmatprep.subr.bf16.mxu0 0
    %347 = vmatpush1.bf16.msra.mxu0 %v344
    %348 = vmatprep.subr.bf16.mxu0 0
    %349 = vmatpush1.bf16.msra.mxu0 0
    %350 = vmatprep.subr.bf16.mxu0 0
    %351 = vmatpush1.bf16.msra.mxu0 0
    %352 = vmatprep.subr.bf16.mxu0 0
    %353 = vmatpush1.bf16.msra.mxu0 0
    %354 = vmatprep.subr.bf16.mxu0 0
    %355 = vmatpush1.bf16.msra.mxu0 0
    %356 = vmatprep.subr.bf16.mxu0 0
    %357 = vmatpush1.bf16.msra.mxu0 0
    %358 = vmatprep.subr.bf16.mxu0 0
    %359 = vmatpush1.bf16.msra.mxu0 0
    %360 = vmatprep.subr.bf16.mxu0 0
    %361 = vmatpush1.bf16.msra.mxu0 0
    %362 = vmatprep.subr.bf16.mxu0 0
    %363 = vmatpush1.bf16.msra.mxu0 0
    %364 = vmatprep.subr.bf16.mxu0 0
    %365 = vmatpush1.bf16.msra.mxu0 0
    %366 = vmatprep.subr.bf16.mxu0 0
    %367 = vmatpush1.bf16.msra.mxu0 0
    %368 = vmatprep.subr.bf16.mxu0 0
    %369 = vmatpush1.bf16.msra.mxu0 0
    %370 = vmatprep.subr.bf16.mxu0 0
    %371 = vmatpush1.bf16.msra.mxu0 0
    %372 = vmatprep.subr.bf16.mxu0 0
    %373 = vmatpush1.bf16.msra.mxu0 0
    %374 = vmatprep.subr.bf16.mxu0 0
    %375 = vmatpush1.bf16.msra.mxu0 0
    %376 = vmatprep.subr.bf16.mxu0 0
    %377 = vmatpush1.bf16.msra.mxu0 0
    %378 = vmatprep.mubr.bf16.mxu0 0
    %379 = vmatmul.mubr.bf16.gmra.mrb[0].mxu0 %v319
    %v380 = vpop.f32.mrb[0].mxu0
    %v381 = vadd.f32 0.0, %v380
    %v382 = vpop.f32.mrb[0].mxu0
    %v383 = vpop.f32.mrb[0].mxu0
    %v384 = vadd.f32 0.0, %v383
    %v385 = vpop.f32.mrb[0].mxu0
    %386 = vmatprep.mubr.bf16.mxu0 0
    %387 = vmatmul.mubr.bf16.gmra.mrb[0].mxu0 %v322
    %v388 = vpop.f32.mrb[0].mxu0
    %v389 = vadd.f32 0.0, %v388
    %v390 = vpop.f32.mrb[0].mxu0
    %v391 = vpop.f32.mrb[0].mxu0
    %v392 = vadd.f32 0.0, %v391
    %v393 = vpop.f32.mrb[0].mxu0
    %394 = vmatprep.mubr.bf16.mxu0 0
    %395 = vmatmul.mubr.bf16.gmra.mrb[0].mxu0 %v325
    %v396 = vpop.f32.mrb[0].mxu0
    %v397 = vadd.f32 0.0, %v396
    %v398 = vpop.f32.mrb[0].mxu0
    %v399 = vpop.f32.mrb[0].mxu0
    %v400 = vadd.f32 0.0, %v399
    %v401 = vpop.f32.mrb[0].mxu0
    %402 = vmatprep.mubr.bf16.mxu0 0
    %403 = vmatmul.mubr.bf16.gmra.mrb[0].mxu0 %v328
    %v404 = vpop.f32.mrb[0].mxu0
    %v405 = vadd.f32 0.0, %v404
    %v406 = vpop.f32.mrb[0].mxu0
    %v407 = vpop.f32.mrb[0].mxu0
    %v408 = vadd.f32 0.0, %v407
    %v409 = vpop.f32.mrb[0].mxu0
    %410 = vmatprep.mubr.bf16.mxu0 0
    %411 = vmatmul.mubr.bf16.gmra.mrb[0].mxu0 %v331
    %v412 = vpop.f32.mrb[0].mxu0
    %v413 = vadd.f32 0.0, %v412
    %v414 = vpop.f32.mrb[0].mxu0
    %v415 = vpop.f32.mrb[0].mxu0
    %v416 = vadd.f32 0.0, %v415
    %v417 = vpop.f32.mrb[0].mxu0
    %418 = vmatprep.mubr.bf16.mxu0 0
    %419 = vmatmul.mubr.bf16.gmra.mrb[0].mxu0 %v334
    %v420 = vpop.f32.mrb[0].mxu0
    %v421 = vadd.f32 0.0, %v420
    %v422 = vpop.f32.mrb[0].mxu0
    %v423 = vpop.f32.mrb[0].mxu0
    %v424 = vadd.f32 0.0, %v423
    %v425 = vpop.f32.mrb[0].mxu0
    %426 = vmatprep.mubr.bf16.mxu0 0
    %427 = vmatmul.mubr.bf16.gmra.mrb[0].mxu0 %v337
    %v428 = vpop.f32.mrb[0].mxu0
    %v429 = vadd.f32 0.0, %v428
    %v430 = vpop.f32.mrb[0].mxu0
    %v431 = vpop.f32.mrb[0].mxu0
    %v432 = vadd.f32 0.0, %v431
    %v433 = vpop.f32.mrb[0].mxu0
    %434 = vmatprep.mubr.bf16.mxu0 0
    %435 = vmatmul.mubr.bf16.gmra.mrb[0].mxu0 %v340
    %v436 = vpop.f32.mrb[0].mxu0
    %v437 = vadd.f32 0.0, %v436
    %v438 = vpop.f32.mrb[0].mxu0
    %v439 = vpop.f32.mrb[0].mxu0
    %v440 = vadd.f32 0.0, %v439
    %v441 = vpop.f32.mrb[0].mxu0
    %442 = vdwg.mxu0
    %v443 = vld [vmem:[%s6] sm:$0x1]
    %v445 = vlaneseq
    %v446 = vshrl.u32 %v445, 7
    %v447 = vsub.s32 0, %v446
    %v448 = vrot.slane %v443, %v447
    %v450 = vmul.f32 %v381, %v448
    %v451 = vmul.f32 %v384, %v448
    %v452 = vmul.f32 %v389, %v448
    %v453 = vmul.f32 %v392, %v448
    %v454 = vmul.f32 %v397, %v448
    %v455 = vmul.f32 %v400, %v448
    %v456 = vmul.f32 %v405, %v448
    %v457 = vmul.f32 %v408, %v448
    %v458 = vmul.f32 %v413, %v448
    %v459 = vmul.f32 %v416, %v448
    %v460 = vmul.f32 %v421, %v448
    %v461 = vmul.f32 %v424, %v448
    %v462 = vmul.f32 %v429, %v448
    %v463 = vmul.f32 %v432, %v448
    %v464 = vmul.f32 %v437, %v448
    %v465 = vmul.f32 %v440, %v448
    %v466 = vld [vmem:[%s7] sm:$0x1]
    %v468 = vlaneseq
    %v469 = vshrl.u32 %v468, 7
    %v470 = vsub.s32 0, %v469
    %v471 = vrot.slane %v466, %v470
    %v473 = vadd.f32 %v450, %v471
    %v474 = vadd.f32 %v451, %v471
    %v475 = vadd.f32 %v452, %v471
    %v476 = vadd.f32 %v453, %v471
    %v477 = vadd.f32 %v454, %v471
    %v478 = vadd.f32 %v455, %v471
    %v479 = vadd.f32 %v456, %v471
    %v480 = vadd.f32 %v457, %v471
    %v481 = vadd.f32 %v458, %v471
    %v482 = vadd.f32 %v459, %v471
    %v483 = vadd.f32 %v460, %v471
    %v484 = vadd.f32 %v461, %v471
    %v485 = vadd.f32 %v462, %v471
    %v486 = vadd.f32 %v463, %v471
    %v487 = vadd.f32 %v464, %v471
    %v488 = vadd.f32 %v465, %v471
    %v489 = vadd.f32 %v244, %v473
    %v490 = vadd.f32 %v245, %v474
    %v491 = vadd.f32 %v246, %v475
    %v492 = vadd.f32 %v247, %v476
    %v493 = vadd.f32 %v248, %v477
    %v494 = vadd.f32 %v249, %v478
    %v495 = vadd.f32 %v250, %v479
    %v496 = vadd.f32 %v251, %v480
    %v497 = vadd.f32 %v252, %v481
    %v498 = vadd.f32 %v253, %v482
    %v499 = vadd.f32 %v254, %v483
    %v500 = vadd.f32 %v255, %v484
    %v501 = vadd.f32 %v256, %v485
    %v502 = vadd.f32 %v257, %v486
    %v503 = vadd.f32 %v258, %v487
    %v504 = vadd.f32 %v259, %v488
    %v505 = vmax.f32 %v489, 0.0
    %v506 = vmax.f32 %v490, 0.0
    %v507 = vmax.f32 %v491, 0.0
    %v508 = vmax.f32 %v492, 0.0
    %v509 = vmax.f32 %v493, 0.0
    %v510 = vmax.f32 %v494, 0.0
    %v511 = vmax.f32 %v495, 0.0
    %v512 = vmax.f32 %v496, 0.0
    %v513 = vmax.f32 %v497, 0.0
    %v514 = vmax.f32 %v498, 0.0
    %v515 = vmax.f32 %v499, 0.0
    %v516 = vmax.f32 %v500, 0.0
    %v517 = vmax.f32 %v501, 0.0
    %v518 = vmax.f32 %v502, 0.0
    %v519 = vmax.f32 %v503, 0.0
    %v520 = vmax.f32 %v504, 0.0
    %vm521 = vcmask 130048
    %522 = vst.msk [vmem:[#allocation2] sm:$0xff] %vm521, %v505
    %523 = vst.msk [vmem:[#allocation2 + $0x8] sm:$0xff] %vm521, %v506
    %524 = vst.msk [vmem:[#allocation2 + $0x10] sm:$0xff] %vm521, %v507
    %525 = vst.msk [vmem:[#allocation2 + $0x18] sm:$0xff] %vm521, %v508
    %526 = vst.msk [vmem:[#allocation2 + $0x20] sm:$0xff] %vm521, %v509
    %527 = vst.msk [vmem:[#allocation2 + $0x28] sm:$0xff] %vm521, %v510
    %528 = vst.msk [vmem:[#allocation2 + $0x30] sm:$0xff] %vm521, %v511
    %529 = vst.msk [vmem:[#allocation2 + $0x38] sm:$0xff] %vm521, %v512
    %530 = vst.msk [vmem:[#allocation2 + $0x40] sm:$0xff] %vm521, %v513
    %531 = vst.msk [vmem:[#allocation2 + $0x48] sm:$0xff] %vm521, %v514
    %532 = vst.msk [vmem:[#allocation2 + $0x50] sm:$0xff] %vm521, %v515
    %533 = vst.msk [vmem:[#allocation2 + $0x58] sm:$0xff] %vm521, %v516
    %534 = vst.msk [vmem:[#allocation2 + $0x60] sm:$0xff] %vm521, %v517
    %535 = vst.msk [vmem:[#allocation2 + $0x68] sm:$0xff] %vm521, %v518
    %536 = vst.msk [vmem:[#allocation2 + $0x70] sm:$0xff] %vm521, %v519
    %537 = vst.msk [vmem:[#allocation2 + $0x78] sm:$0xff] %vm521, %v520
    // Predicated region
    $region34: #{conv_block_forward.5} parent=1 // pred_check
      _
    $region35: #{conv_block_forward.5} parent=1 // pred_check_branch
      %539 = sbr.rel (0) target = $region37
    $region36: #{conv_block_forward.5} parent=1 // pred_region
      %s541 = ssub.s32 2048, 2048
      %542 = vsyncadd [#allocation3], %s541
      %s543 = sshll.u32 [#allocation2], 4
      %s544 = int_to_ptr.vmem [resolvable:$true] %s543
      %549 = dma.vmem_to_hbm [thread:$0]  %s544, 2048, %s8, [#allocation3], 128, 128, 8
    $region37: #{conv_block_forward.5} parent=1 // pred_fallthru
      _
    // Predicated region
    $region38: #{conv_block_forward.5} parent=1 // pred_check
      _
    $region39: #{conv_block_forward.5} parent=1 // pred_check_branch
      %551 = sbr.rel (0) target = $region41
    $region40: #{conv_block_forward.5} parent=1 // pred_region
      %552 = dma.done [#allocation3], 2048
    $region41: #{conv_block_forward.5} parent=1 // pred_fallthru
      _
    %553 = vsyncpa [#allocation3], 1

</llo_original>
